<compile_context>
chip_gen: v7x
topology: tpu7x:2x2x1
jax: 0.10.0
libtpu: 0.0.40
codegen_flags: <defaults>
</compile_context>

<pallas_src>
from functools import partial, lru_cache

import jax
import jax.numpy as jnp
from jax.experimental import pallas as pl
from jax.experimental.pallas import tpu as pltpu

BN_EPS = 1e-5
ACT_DTYPE = jnp.bfloat16                      # activation / MXU operand dtype
SMEM = pltpu.MemorySpace.SMEM


def _pair(v):
    return (v, v) if isinstance(v, int) else tuple(v)


def _apply_act(y, act):
    if act == "relu":
        return jnp.maximum(y, 0.0)
    if act == "sigmoid":
        return jax.nn.sigmoid(y)              # EUP logistic path
    return y


def _dense_shape(shape):
    """Pick a sublane/lane-dense 2-D view (R, L) with L a multiple of 128."""
    size = 1
    for d in shape:
        size *= int(d)
    if size % 128 == 0:
        L = 128
        while size % (2 * L) == 0 and size // (2 * L) >= 8 and 2 * L <= 2048:
            L *= 2
        return size // L, L
    return int(shape[0]), size // int(shape[0])


# ----------------------------------------------------------------------------
# Fused conv GEMM kernel: one GEMM per layer, weight resident, lane = N*OH*OW.
# ----------------------------------------------------------------------------
def _gemm_kernel(w_ref, x_ref, b_ref, o_ref, *, act):
    y = jnp.dot(w_ref[...], x_ref[...], preferred_element_type=jnp.float32)
    y = y + b_ref[...]
    o_ref[...] = _apply_act(y, act).astype(o_ref.dtype)


def _gemm_res_kernel(w_ref, x_ref, b_ref, r_ref, o_ref, *, act):
    y = jnp.dot(w_ref[...], x_ref[...], preferred_element_type=jnp.float32)
    y = y + b_ref[...] + r_ref[...].astype(jnp.float32)
    o_ref[...] = _apply_act(y, act).astype(o_ref.dtype)


def _choose_tile_cout(cout, K):
    # Cap the bf16 weight tile at ~4 MiB: double-buffered W + col + out stays
    # well under v5e's 16 MiB scoped default (and v7x's 64 MiB physical VMEM).
    if cout * K * 2 <= (4 << 20):
        return cout
    for tc in (256, 128, 64, 32, 16, 8):
        if cout % tc == 0:
            return tc
    return cout


@lru_cache(maxsize=None)
def _get_gemm_call(cout, K, L, act, has_res):
    tc = _choose_tile_cout(cout, K)
    grid = (cout // tc,)
    in_specs = [
        pl.BlockSpec((tc, K), lambda j: (j, 0)),      # W (bf16, scale pre-folded)
        pl.BlockSpec((K, L), lambda j: (0, 0)),       # col: resident across tiles
        pl.BlockSpec((tc, 1), lambda j: (j, 0)),      # bias (f32)
    ]
    if has_res:
        in_specs.append(pl.BlockSpec((tc, L), lambda j: (j, 0)))
        kernel = partial(_gemm_res_kernel, act=act)
    else:
        kernel = partial(_gemm_kernel, act=act)
    bytes_accessed = 2 * (cout * K + K * L + cout * L) + 4 * cout
    if has_res:
        bytes_accessed += 2 * cout * L
    return pl.pallas_call(
        kernel,
        out_shape=jax.ShapeDtypeStruct((cout, L), ACT_DTYPE),
        grid=grid,
        in_specs=in_specs,
        out_specs=pl.BlockSpec((tc, L), lambda j: (j, 0)),
        compiler_params=pltpu.CompilerParams(
            dimension_semantics=("parallel",),
            vmem_limit_bytes=32 << 20),
        cost_estimate=pl.CostEstimate(
            flops=2 * cout * K * L,
            transcendentals=cout * L if act == "sigmoid" else 0,
            bytes_accessed=bytes_accessed),
    )


# ----------------------------------------------------------------------------
# Conv = channel-major im2col (JAX glue, bf16) + one fused Pallas GEMM.
# Activations are (Cin, N, H, W); col is (Cin*kh*kw, N*OH*OW) -> lane dense.
# ----------------------------------------------------------------------------
def _im2col(x, kh, kw, stride, padding, dilation):
    C, N, H, W = x.shape
    sh, sw = stride
    ph, pw = padding
    dh, dw = dilation
    xp = jnp.pad(x, ((0, 0), (0, 0), (ph, ph), (pw, pw))) if (ph or pw) else x
    Hp, Wp = H + 2 * ph, W + 2 * pw
    oh = (Hp - dh * (kh - 1) - 1) // sh + 1
    ow = (Wp - dw * (kw - 1) - 1) // sw + 1
    cols = []
    for i in range(kh):
        for j in range(kw):
            hi, wi = i * dh, j * dw
            cols.append(xp[:, :, hi:hi + sh * (oh - 1) + 1:sh,
                           wi:wi + sw * (ow - 1) + 1:sw])
    # (C, kh*kw, N, oh, ow) -> (C*kh*kw, N*oh*ow); row order matches W flatten.
    col = jnp.stack(cols, axis=1).reshape(C * kh * kw, N * oh * ow)
    return col, oh, ow


def conv2d(x, cp, stride=1, padding=0, dilation=1, act="none", residual=None):
    kh, kw, cout = cp["kh"], cp["kw"], cp["cout"]
    st, pd, dl = _pair(stride), _pair(padding), _pair(dilation)
    x = x.astype(ACT_DTYPE)
    Cin, N = x.shape[0], x.shape[1]
    if (kh, kw) == (1, 1) and pd == (0, 0) and dl == (1, 1):
        xs = x if st == (1, 1) else x[:, :, ::st[0], ::st[1]]
        oh, ow = xs.shape[2], xs.shape[3]
        col = xs.reshape(Cin, N * oh * ow)          # no copy for stride 1
    else:
        col, oh, ow = _im2col(x, kh, kw, st, pd, dl)
    K, L = int(col.shape[0]), int(col.shape[1])
    call = _get_gemm_call(cout, K, L, act, residual is not None)
    args = [cp["w"], col, cp["b"]]
    if residual is not None:
        args.append(residual.astype(ACT_DTYPE).reshape(cout, L))
    y = call(*args)
    return y.reshape(cout, N, oh, ow)


# ----------------------------------------------------------------------------
# FGSE attention: both directions in ONE pallas_call, grid=(2B,); gamma from
# SMEM via program_id.  attT = k^T q, softmax over the query (lane) axis,
# out = v @ attT, gamma-residual + ReLU fused in the epilogue.
# ----------------------------------------------------------------------------
def _attn_kernel(g_ref, q_ref, k_ref, v_ref, x_ref, o_ref):
    g = g_ref[pl.program_id(0)]
    # attT[hwk, hw] = sum_c k[c, hwk] * q[c, hw]  (== energy[hw, hwk]^T)
    att = jax.lax.dot_general(k_ref[...], q_ref[...], (((0,), (0,)), ((), ())),
                              preferred_element_type=jnp.float32)
    att = att - jnp.max(att, axis=1, keepdims=True)       # softmax over q axis
    p = jnp.exp(att)
    p = p * pl.reciprocal(jnp.sum(p, axis=1, keepdims=True), approx=True)
    o = jnp.dot(v_ref[...], p.astype(v_ref.dtype),
                preferred_element_type=jnp.float32)        # (C, HW)
    o = g * o + x_ref[...].astype(jnp.float32)
    o_ref[...] = jnp.maximum(o, 0.0).astype(o_ref.dtype)


@lru_cache(maxsize=None)
def _get_attn_call(NB, C, HW, HWk):
    return pl.pallas_call(
        _attn_kernel,
        out_shape=jax.ShapeDtypeStruct((NB, C, HW), ACT_DTYPE),
        grid=(NB,),
        in_specs=[
            pl.BlockSpec(memory_space=SMEM),                      # gamma (NB,)
            pl.BlockSpec((None, C, HW), lambda b: (b, 0, 0)),     # q
            pl.BlockSpec((None, C, HWk), lambda b: (b, 0, 0)),    # k
            pl.BlockSpec((None, C, HWk), lambda b: (b, 0, 0)),    # v
            pl.BlockSpec((None, C, HW), lambda b: (b, 0, 0)),     # residual x
        ],
        out_specs=pl.BlockSpec((None, C, HW), lambda b: (b, 0, 0)),
        compiler_params=pltpu.CompilerParams(
            dimension_semantics=("parallel",)),
        cost_estimate=pl.CostEstimate(
            flops=4 * NB * C * HW * HWk,
            transcendentals=NB * HW * HWk,
            bytes_accessed=2 * NB * (3 * C * HW + 2 * C * HWk)),
    )


def fgse_attention_pair(q_rd, k_rd, v_rd, xr, q_dr, k_dr, v_dr, xd,
                        gamma_rd, gamma_dr):
    C, B, H, W = q_rd.shape
    HW = H * W
    HWk = int(k_rd.shape[2]) * int(k_rd.shape[3])

    def stk(a, hw):                        # (C, B, h, w) -> (B, C, hw)
        return jnp.moveaxis(a.reshape(C, B, hw), 0, 1).astype(ACT_DTYPE)

    q = jnp.concatenate([stk(q_rd, HW), stk(q_dr, HW)], axis=0)
    k = jnp.concatenate([stk(k_rd, HWk), stk(k_dr, HWk)], axis=0)
    v = jnp.concatenate([stk(v_rd, HWk), stk(v_dr, HWk)], axis=0)
    xres = jnp.concatenate([stk(xr, HW), stk(xd, HW)], axis=0)
    g = jnp.concatenate(
        [jnp.broadcast_to(jnp.asarray(gamma_rd, jnp.float32), (B,)),
         jnp.broadcast_to(jnp.asarray(gamma_dr, jnp.float32), (B,))])
    out = _get_attn_call(2 * B, C, HW, HWk)(g, q, k, v, xres)      # (2B, C, HW)
    out_rd = jnp.moveaxis(out[:B], 0, 1).reshape(C, B, H, W)
    out_dr = jnp.moveaxis(out[B:], 0, 1).reshape(C, B, H, W)
    return out_rd, out_dr


# ----------------------------------------------------------------------------
# FGSE tail: relu((x + merge)/2) for the rgb/hha pair in one grid-2 kernel
# (merge read once via a constant index_map); lane/sublane-dense views.
# ----------------------------------------------------------------------------
def _avg_res_kernel(x_ref, m_ref, o_ref):
    z = 0.5 * (x_ref[...].astype(jnp.float32) + m_ref[...].astype(jnp.float32))
    o_ref[...] = jnp.maximum(z, 0.0).astype(o_ref.dtype)


@lru_cache(maxsize=None)
def _get_avg_res_call(R, L):
    return pl.pallas_call(
        _avg_res_kernel,
        out_shape=jax.ShapeDtypeStruct((2, R, L), ACT_DTYPE),
        grid=(2,),
        in_specs=[pl.BlockSpec((None, R, L), lambda i: (i, 0, 0)),
                  pl.BlockSpec((R, L), lambda i: (0, 0))],
        out_specs=pl.BlockSpec((None, R, L), lambda i: (i, 0, 0)),
        compiler_params=pltpu.CompilerParams(
            dimension_semantics=("parallel",)),
        cost_estimate=pl.CostEstimate(flops=4 * R * L, transcendentals=0,
                                      bytes_accessed=2 * 5 * R * L),
    )


def fgse_avg_residual(xr, xd, merge):
    C, B, H, W = xr.shape
    R, L = _dense_shape(xr.shape)
    xs = jnp.stack([xr.reshape(R, L), xd.reshape(R, L)], axis=0)
    out = _get_avg_res_call(R, L)(xs, merge.astype(ACT_DTYPE).reshape(R, L))
    out = out.reshape(2, C, B, H, W)
    return jnp.moveaxis(out, 0, 1).reshape(C, 2 * B, H, W)


# ----------------------------------------------------------------------------
# SEM gate: out[i] = gamma[i] * a[i] * sigmoid(f) + y[i]  (rgb/t in one call,
# sigmoid fused here instead of in the fus-conv epilogue).
# ----------------------------------------------------------------------------
def _sem_gate_kernel(c_ref, a_ref, f_ref, y_ref, o_ref):
    g = c_ref[pl.program_id(0)]
    att = jax.nn.sigmoid(f_ref[...].astype(jnp.float32))
    z = g * a_ref[...].astype(jnp.float32) * att + y_ref[...].astype(jnp.float32)
    o_ref[...] = z.astype(o_ref.dtype)


@lru_cache(maxsize=None)
def _get_sem_gate_call(R, L):
    return pl.pallas_call(
        _sem_gate_kernel,
        out_shape=jax.ShapeDtypeStruct((2, R, L), ACT_DTYPE),
        grid=(2,),
        in_specs=[
            pl.BlockSpec(memory_space=SMEM),                     # (gamma_rf, gamma_tf)
            pl.BlockSpec((None, R, L), lambda i: (i, 0, 0)),     # relu(conv(x))
            pl.BlockSpec((R, L), lambda i: (0, 0)),              # pre-sigmoid att
            pl.BlockSpec((None, R, L), lambda i: (i, 0, 0)),     # residual
        ],
        out_specs=pl.BlockSpec((None, R, L), lambda i: (i, 0, 0)),
        compiler_params=pltpu.CompilerParams(
            dimension_semantics=("parallel",)),
        cost_estimate=pl.CostEstimate(flops=6 * R * L, transcendentals=2 * R * L,
                                      bytes_accessed=2 * 7 * R * L),
    )


def maxpool_3x3_s2_p1(x):
    # JAX glue; PyTorch MaxPool2d(3, 2, 1) semantics (pad with -inf).
    return jax.lax.reduce_window(
        x, jnp.array(-jnp.inf, x.dtype), jax.lax.max,
        (1, 1, 3, 3), (1, 1, 2, 2),
        ((0, 0), (0, 0), (1, 1), (1, 1)))


# ----------------------------------------------------------------------------
# Deterministic parameter init + GEMM-ready weight preparation (done ONCE).
# ----------------------------------------------------------------------------
class PInit:
    def __init__(self, seed):
        self.key = jax.random.PRNGKey(seed)

    def _next(self):
        self.key, sub = jax.random.split(self.key)
        return sub

    def conv_w(self, cout, cin, kh, kw):
        std = (2.0 / (cin * kh * kw)) ** 0.5
        return jax.random.normal(self._next(), (cout, cin, kh, kw), jnp.float32) * std

    def vec(self, n):
        return jax.random.normal(self._next(), (n,), jnp.float32) * 0.02


def prep_conv(w, b=None, bn=False):
    """Flatten the weight, fold conv-bias + eval-mode BN (identity stats) into a
    per-output-channel scale/bias, fold the scale INTO the bf16 weight."""
    cout, cin, kh, kw = w.shape
    if bn:
        s = jnp.full((cout,), (1.0 + BN_EPS) ** -0.5, jnp.float32)
    else:
        s = jnp.ones((cout,), jnp.float32)
    wf = (w.reshape(cout, cin * kh * kw) * s[:, None]).astype(ACT_DTYPE)
    bias = (b if b is not None else jnp.zeros((cout,), jnp.float32)) * s
    return {"w": wf, "b": bias.reshape(cout, 1),
            "kh": int(kh), "kw": int(kw), "cout": int(cout)}


def concat_convs(cps):
    """Fuse convs that share the same input / kernel geometry into one GEMM."""
    return {"w": jnp.concatenate([c["w"] for c in cps], axis=0),
            "b": jnp.concatenate([c["b"] for c in cps], axis=0),
            "kh": cps[0]["kh"], "kw": cps[0]["kw"],
            "cout": sum(c["cout"] for c in cps)}


# ----------------------------------------------------------------------------
# ResNet-34 backbone (BasicBlock, layers [3, 4, 6, 3])
# ----------------------------------------------------------------------------
def make_resnet34(p):
    net = {"conv1": prep_conv(p.conv_w(64, 3, 7, 7), bn=True), "layers": []}
    cfgs = [(64, 3, 1), (128, 4, 2), (256, 6, 2), (512, 3, 2)]
    inpl = 64
    for planes, nblocks, stride in cfgs:
        blocks = []
        for bi in range(nblocks):
            s = stride if bi == 0 else 1
            blk = {"conv1": prep_conv(p.conv_w(planes, inpl, 3, 3), bn=True),
                   "conv2": prep_conv(p.conv_w(planes, planes, 3, 3), bn=True),
                   "stride": s}
            if s != 1 or inpl != planes:
                blk["down"] = prep_conv(p.conv_w(planes, inpl, 1, 1), bn=True)
            blocks.append(blk)
            inpl = planes
        net["layers"].append(blocks)
    return net


def basicblock_fwd(x, blk):
    out = conv2d(x, blk["conv1"], stride=blk["stride"], padding=1, act="relu")
    idn = conv2d(x, blk["down"], stride=blk["stride"]) if "down" in blk else x
    # residual add + ReLU fused into the conv2 GEMM epilogue
    return conv2d(out, blk["conv2"], padding=1, act="relu", residual=idn)


# ----------------------------------------------------------------------------
# FGSE
# ----------------------------------------------------------------------------
def make_fgse(p, dim, sr):
    m = {"dim": dim, "sr": sr}

    def proj():
        return prep_conv(p.conv_w(dim, dim, 1, 1), b=p.vec(dim))

    q_rd, k_rd, v_rd = proj(), proj(), proj()
    q_dr, k_dr, v_dr = proj(), proj(), proj()
    if sr > 1:
        sr_k = prep_conv(p.conv_w(dim, dim, sr, sr), b=p.vec(dim), bn=True)
        sr_v = prep_conv(p.conv_w(dim, dim, sr, sr), b=p.vec(dim), bn=True)
        sr_kk = prep_conv(p.conv_w(dim, dim, sr, sr), b=p.vec(dim), bn=True)
        sr_vv = prep_conv(p.conv_w(dim, dim, sr, sr), b=p.vec(dim), bn=True)
        m["sr_d"] = concat_convs([sr_k, sr_v])      # both act on xd
        m["sr_r"] = concat_convs([sr_kk, sr_vv])    # both act on xr
        m.update(q_rd=q_rd, k_rd=k_rd, v_rd=v_rd, q_dr=q_dr, k_dr=k_dr, v_dr=v_dr)
    else:
        m["proj_r"] = concat_convs([q_rd, k_dr, v_dr])   # all act on xr
        m["proj_d"] = concat_convs([q_dr, k_rd, v_rd])   # all act on xd
    m["gamma_rd"] = jnp.zeros((), jnp.float32)
    m["gamma_dr"] = jnp.zeros((), jnp.float32)
    m["fc1"] = prep_conv(p.conv_w(dim // 2, dim * 2, 1, 1), b=p.vec(dim // 2))
    m["fc2"] = prep_conv(p.conv_w(dim * 2, dim // 2, 1, 1), b=p.vec(dim * 2))
    m["merge"] = prep_conv(p.conv_w(dim, dim * 2, 1, 1), b=p.vec(dim))
    return m


def fgse_fwd(m, xr, xd):
    C, B, H, W = xr.shape
    sr = m["sr"]
    if sr == 1:
        pr = conv2d(xr, m["proj_r"])            # [q_rd | k_dr | v_dr]
        pd = conv2d(xd, m["proj_d"])            # [q_dr | k_rd | v_rd]
        q_rd, k_dr, v_dr = pr[:C], pr[C:2 * C], pr[2 * C:]
        q_dr, k_rd, v_rd = pd[:C], pd[C:2 * C], pd[2 * C:]
    else:
        sd = conv2d(xd, m["sr_d"], stride=sr)   # [sr_k(xd)+BN | sr_v(xd)+BN]
        srr = conv2d(xr, m["sr_r"], stride=sr)  # [sr_kk(xr)+BN | sr_vv(xr)+BN]
        kd, vd = sd[:C], sd[C:]
        kr, vr = srr[:C], srr[C:]
        q_rd, k_rd, v_rd = conv2d(xr, m["q_rd"]), conv2d(kd, m["k_rd"]), conv2d(vd, m["v_rd"])
        q_dr, k_dr, v_dr = conv2d(xd, m["q_dr"]), conv2d(kr, m["k_dr"]), conv2d(vr, m["v_dr"])
    # fused: both attention directions + softmax(dim=1) + gamma residual + ReLU
    out_rd, out_dr = fgse_attention_pair(q_rd, k_rd, v_rd, xr,
                                         q_dr, k_dr, v_dr, xd,
                                         m["gamma_rd"], m["gamma_dr"])
    rgb_gap = out_rd.astype(jnp.float32).mean(axis=(2, 3), keepdims=True)
    hha_gap = out_dr.astype(jnp.float32).mean(axis=(2, 3), keepdims=True)
    stack = jnp.concatenate([rgb_gap, hha_gap], axis=0).astype(ACT_DTYPE)  # (2C,B,1,1)
    stack = conv2d(stack, m["fc1"], act="relu")
    stack = conv2d(stack, m["fc2"])
    # TODO(synk): channel-gate multiply kept in XLA glue (tiny tensors).
    rgb_ = (stack[:C].astype(jnp.float32) * out_rd.astype(jnp.float32)).astype(ACT_DTYPE)
    hha_ = (stack[C:].astype(jnp.float32) * out_dr.astype(jnp.float32)).astype(ACT_DTYPE)
    merge = conv2d(jnp.concatenate([rgb_, hha_], axis=0), m["merge"], act="relu")
    return fgse_avg_residual(xr, xd, merge)           # (C, 2B, H, W)


# ----------------------------------------------------------------------------
# SEM
# ----------------------------------------------------------------------------
def make_sem(p, in_dim, out_dim):
    return {"rgb": prep_conv(p.conv_w(out_dim, in_dim, 3, 3), b=p.vec(out_dim)),
            "t": prep_conv(p.conv_w(out_dim, in_dim, 3, 3), b=p.vec(out_dim)),
            "fus": prep_conv(p.conv_w(out_dim, out_dim, 3, 3), b=p.vec(out_dim)),
            "gamma_rf": jnp.zeros((), jnp.float32),
            "gamma_tf": jnp.zeros((), jnp.float32)}


def sem_fwd(m, rgb, t, fus):
    x_rgb = conv2d(rgb, m["rgb"], padding=1, act="relu")
    x_t = conv2d(t, m["t"], padding=1, act="relu")
    fpre = conv2d(fus, m["fus"], padding=1)        # sigmoid fused into gate kernel
    C, B, H, W = x_rgb.shape
    R, L = _dense_shape(x_rgb.shape)
    a = jnp.stack([x_rgb.reshape(R, L), x_t.reshape(R, L)], axis=0)
    y = jnp.stack([rgb.astype(ACT_DTYPE).reshape(R, L),
                   t.astype(ACT_DTYPE).reshape(R, L)], axis=0)
    coef = jnp.stack([jnp.asarray(m["gamma_rf"], jnp.float32),
                      jnp.asarray(m["gamma_tf"], jnp.float32)])
    out = _get_sem_gate_call(R, L)(coef, a, fpre.reshape(R, L), y)
    out = out.reshape(2, C, B, H, W)
    return jnp.moveaxis(out, 0, 1).reshape(C, 2 * B, H, W), fus


# ----------------------------------------------------------------------------
# GCM / BasicConv2d / CP heads
# ----------------------------------------------------------------------------
def make_gcm(p, cin, cout):
    co = cout
    w_b0 = p.conv_w(co, cin, 1, 1)
    w_b1 = [p.conv_w(co, cin, 1, 1), p.conv_w(co, co, 1, 3),
            p.conv_w(co, co, 3, 1), p.conv_w(co, co, 3, 3)]
    w_b2 = [p.conv_w(co, cin, 1, 1), p.conv_w(co, co, 1, 5),
            p.conv_w(co, co, 5, 1), p.conv_w(co, co, 3, 3)]
    w_b3 = [p.conv_w(co, cin, 1, 1), p.conv_w(co, co, 1, 7),
            p.conv_w(co, co, 7, 1), p.conv_w(co, co, 3, 3)]
    w_res = p.conv_w(co, cin, 1, 1)
    w_cat = p.conv_w(co, 4 * co, 3, 3)

    # five 1x1 convs that share x (branch heads + conv_res) fused into one GEMM
    heads = prep_conv(jnp.concatenate([w_b0, w_b1[0], w_b2[0], w_b3[0], w_res],
                                      axis=0), bn=True)

    def blockdiag(ws, kh, kw):
        # Zero-extend each kernel to (kh, kw) and place block-diagonally; exact
        # because zero-extension + matching extra padding is a no-op.
        n = len(ws)
        W = jnp.zeros((n * co, n * co, kh, kw), jnp.float32)
        for i, w in enumerate(ws):
            khi, kwi = int(w.shape[2]), int(w.shape[3])
            oh, ow = (kh - khi) // 2, (kw - kwi) // 2
            W = W.at[i * co:(i + 1) * co, i * co:(i + 1) * co,
                     oh:oh + khi, ow:ow + kwi].set(w)
        return W

    # identity-stat BN (same scale per channel) folds correctly after assembly
    return {"heads": heads,
            "wA": prep_conv(blockdiag([w_b1[1], w_b2[1], w_b3[1]], 1, 7), bn=True),
            "wB": prep_conv(blockdiag([w_b1[2], w_b2[2], w_b3[2]], 7, 1), bn=True),
            "d1": prep_conv(w_b1[3], bn=True),
            "d2": prep_conv(w_b2[3], bn=True),
            "d3": prep_conv(w_b3[3], bn=True),
            "cat": prep_conv(w_cat, bn=True),
            "cout": co}


def gcm_fwd(g, x):
    co = g["cout"]
    y = conv2d(x, g["heads"])                       # [x0 | b1h | b2h | b3h | res]
    x0, mid, xres = y[:co], y[co:4 * co], y[4 * co:]
    mid = conv2d(mid, g["wA"], padding=(0, 3))      # fused block-diag 1x7
    mid = conv2d(mid, g["wB"], padding=(3, 0))      # fused block-diag 7x1
    x1 = conv2d(mid[:co], g["d1"], padding=3, dilation=3)
    x2 = conv2d(mid[co:2 * co], g["d2"], padding=5, dilation=5)
    x3 = conv2d(mid[2 * co:], g["d3"], padding=7, dilation=7)
    xc = jnp.concatenate([x0, x1, x2, x3], axis=0)
    # conv_res output fused as the residual of the concat-conv (+ReLU)
    return conv2d(xc, g["cat"], padding=1, act="relu", residual=xres)


def make_cp(p):
    cfg = [(64, 64), (128, 64), (256, 96), (512, 128)]
    return [{"conv": prep_conv(p.conv_w(cmid, cin, 3, 3), b=p.vec(cmid)),
             "gcm": make_gcm(p, cmid, 64)} for cin, cmid in cfg]


def cp_fwd(cp, x):
    x = conv2d(x, cp["conv"], padding=1, act="relu")
    return gcm_fwd(cp["gcm"], x)


# ----------------------------------------------------------------------------
# SiameseEncoder
# ----------------------------------------------------------------------------
def make_model(seed=0):
    p = PInit(seed)
    return {"backbone": make_resnet34(p),
            "cp": make_cp(p),
            "fgse": [make_fgse(p, 64, 4), make_fgse(p, 128, 4),
                     make_fgse(p, 256, 2), make_fgse(p, 512, 1)],
            "sem": [make_sem(p, 64, 64), make_sem(p, 128, 128),
                    make_sem(p, 256, 256), make_sem(p, 512, 512)]}


def siamese_encoder_fwd(model, x):
    """x: (3*B, 3, H, W) float32 NCHW -> list of 4 feature maps (3*B, 64, Hi, Wi)."""
    bb = model["backbone"]
    xc = jnp.moveaxis(x, 0, 1).astype(ACT_DTYPE)          # channel-major (3, 3B, H, W)
    cur = conv2d(xc, bb["conv1"], stride=2, padding=3, act="relu")
    cur = maxpool_3x3_s2_p1(cur)
    tmp = []
    for i in range(4):
        xi = cur
        for blk in bb["layers"][i]:
            xi = basicblock_fwd(xi, blk)
        N = xi.shape[1]
        B = N // 3
        rgb, t, fus = xi[:, :B], xi[:, B:2 * B], xi[:, 2 * B:]
        rgbt, fus = sem_fwd(model["sem"][i], rgb, t, fus)
        att = fgse_fwd(model["fgse"][i], rgbt[:, :B], rgbt[:, B:])
        res = jnp.concatenate([att, fus], axis=1)          # (C, 3B, H, W)
        tmp.append(res)
        cur = res
    feats = [cp_fwd(model["cp"][i], tmp[i]) for i in range(4)]
    return [jnp.moveaxis(f, 0, 1) for f in feats]          # back to NCHW


if __name__ == "__main__":
    model = make_model(seed=0)
    key = jax.random.PRNGKey(0)
    # batch is 3*B (rgb / thermal / fused stacks), B = 1; spatial 64x64.
    x = jax.random.normal(key, (3, 3, 64, 64), jnp.float32)
    feats = siamese_encoder_fwd(model, x)
    expected = [(3, 64, 16, 16), (3, 64, 8, 8), (3, 64, 4, 4), (3, 64, 2, 2)]
    for f, es in zip(feats, expected):
        jax.block_until_ready(f)
        assert f.shape == es, (f.shape, es)
        assert bool(jnp.all(jnp.isfinite(f.astype(jnp.float32))))
    print("KERNEL_OK")
</pallas_src>

<mosaic_0001>
module attributes {stable_mosaic.version = 11 : i64} {
  func.func @_gemm_kernel(%arg0: i32, %arg1: memref<64x147xbf16, #tpu.memory_space<vmem>>, %arg2: memref<147x3072xbf16, #tpu.memory_space<vmem>>, %arg3: memref<64x1xf32, #tpu.memory_space<vmem>>, %arg4: memref<64x3072xbf16, #tpu.memory_space<vmem>>) attributes {dimension_semantics = [#tpu.dimension_semantics<parallel>], iteration_bounds = array<i64: 1>, scalar_prefetch = 0 : i64, scratch_operands = 0 : i64, tpu.core_type = #tpu.core_type<tc>, window_params = [{transform_indices = @transform_0, window_bounds = array<i64: 64, 147>}, {pipeline_mode = #tpu.pipeline_mode<synchronous>, transform_indices = @transform_1, window_bounds = array<i64: 147, 3072>}, {transform_indices = @transform_2, window_bounds = array<i64: 64, 1>}, {transform_indices = @transform_3, window_bounds = array<i64: 64, 3072>}]} {
    %c0 = arith.constant 0 : index
    %c0_0 = arith.constant 0 : index
    %0 = vector.load %arg1[%c0, %c0_0] : memref<64x147xbf16, #tpu.memory_space<vmem>>, vector<64x147xbf16>
    %c0_1 = arith.constant 0 : index
    %c0_2 = arith.constant 0 : index
    %1 = vector.load %arg2[%c0_1, %c0_2] : memref<147x3072xbf16, #tpu.memory_space<vmem>>, vector<147x3072xbf16>
    %cst = arith.constant dense<0.000000e+00> : vector<64x3072xf32>
    %2 = tpu.matmul %0, %1, %cst {dimension_numbers = #tpu.dot_dimension_numbers<[1], [0], [0], [1], [0, 0, 1, 1], [], []>} : vector<64x147xbf16>, vector<147x3072xbf16>, vector<64x3072xf32> -> vector<64x3072xf32>
    %c0_3 = arith.constant 0 : index
    %c0_4 = arith.constant 0 : index
    %3 = vector.load %arg3[%c0_3, %c0_4] : memref<64x1xf32, #tpu.memory_space<vmem>>, vector<64x1xf32>
    %4 = vector.broadcast %3 : vector<64x1xf32> to vector<64x3072xf32>
    %5 = arith.addf %2, %4 : vector<64x3072xf32>
    %cst_5 = arith.constant 0.000000e+00 : f32
    %6 = vector.broadcast %cst_5 : f32 to vector<64x3072xf32>
    %7 = arith.maximumf %5, %6 : vector<64x3072xf32>
    %8 = arith.truncf %7 : vector<64x3072xf32> to vector<64x3072xbf16>
    %c0_6 = arith.constant 0 : index
    %c0_7 = arith.constant 0 : index
    %9 = vector.load %arg4[%c0_6, %c0_7] : memref<64x3072xbf16, #tpu.memory_space<vmem>>, vector<64x3072xbf16>
    tpu.vector_store %arg4[%c0_6, %c0_7], %8 {strides = array<i32>} : memref<64x3072xbf16, #tpu.memory_space<vmem>>, vector<64x3072xbf16>,
    return
  }
  func.func @transform_0(%arg0: i32) -> (i32, i32) {
    %c0_i32 = arith.constant 0 : i32
    %c0_i32_0 = arith.constant 0 : i32
    return %arg0, %c0_i32 : i32, i32
  }
  func.func @transform_1(%arg0: i32) -> (i32, i32) {
    %c0_i32 = arith.constant 0 : i32
    %c0_i32_0 = arith.constant 0 : i32
    %c0_i32_1 = arith.constant 0 : i32
    return %c0_i32, %c0_i32_0 : i32, i32
  }
  func.func @transform_2(%arg0: i32) -> (i32, i32) {
    %c0_i32 = arith.constant 0 : i32
    %c0_i32_0 = arith.constant 0 : i32
    return %arg0, %c0_i32 : i32, i32
  }
  func.func @transform_3(%arg0: i32) -> (i32, i32) {
    %c0_i32 = arith.constant 0 : i32
    %c0_i32_0 = arith.constant 0 : i32
    return %arg0, %c0_i32 : i32, i32
  }
}

</mosaic_0001>

<llo_original>
// kernel: tpu_custom_call.1
$region0: #{tpu_custom_call.1}
  #allocation0 [shape = 'u32[]', space=smem, size = 0x4, offset = 0x4, fixed_abs, tag = 'smem constant byte address 0x4 - core index']
  #allocation1 [shape = 'u32[144,128]{1,0:T(1,128)}', space=vmem, size = 0x12000, scoped, tag = 'internal scratch']
  %s0 = inlined_call_operand.vmem [shape: bf16[64,147], index: 0, kind: input, shape index: {}]
  %s1 = inlined_call_operand.hbm [shape: bf16[147,3072], index: 1, kind: input, shape index: {}]
  %s2 = inlined_call_operand.vmem [shape: f32[64,1], index: 2, kind: input, shape index: {}]
  %s3 = inlined_call_operand.hbm [shape: bf16[64,3072], index: 3, kind: output, shape index: {}]
  %s4 = sld [smem:[#allocation0]]
  $region26: #{tpu_custom_call.1} parent=0
    _
  %s6 = ssub.s32 1, %s4
  %s7 = scalar_select 0, %s6, %s4
  $region1: #{tpu_custom_call.1} parent=0
    #allocation2 [shape = 'u8[933888]{0}', space=vmem, size = 0xe4000, scoped, tag = 'input window, operand 1, single buffered']
    #allocation3 [shape = 's32[1]{0}', space=sflag, size = 0x4, scoped, tag = 'scoped memory for tpu_custom_call.1']
    #allocation4 [shape = 's32[1]{0}', space=sflag, size = 0x4, scoped, tag = 'scoped memory for tpu_custom_call.1']
    #allocation5 [shape = 'u8[393216]{0}', space=vmem, size = 0x60000, scoped, tag = 'output window, operand 0, single buffered']
    %8 = vsyncpa [#allocation3], 0
    %9 = vsyncpa [#allocation4], 0
    // Predicated region
    $region2: #{tpu_custom_call.1} parent=1 // pred_check
      _
    $region3: #{tpu_custom_call.1} parent=1 // pred_check_branch
      %11 = sbr.rel (0) target = $region5
    $region4: #{tpu_custom_call.1} parent=1 // pred_region
      _
    $region5: #{tpu_custom_call.1} parent=1 // pred_fallthru
      _
    // Predicated region
    $region6: #{tpu_custom_call.1} parent=1 // pred_check
      _
    $region7: #{tpu_custom_call.1} parent=1 // pred_check_branch
      %13 = sbr.rel (0) target = $region9
    $region8: #{tpu_custom_call.1} parent=1 // pred_region
      %s15 = ssub.s32 29184, 29184
      %16 = vsyncadd [#allocation3], %s15
      %s17 = sshll.u32 [#allocation2], 4
      %s18 = int_to_ptr.vmem [resolvable:$true] %s17
      %23 = dma.hbm_to_vmem [thread:$0]  %s1, 29184, %s18, [#allocation3], 1536, 1536, 96
    $region9: #{tpu_custom_call.1} parent=1 // pred_fallthru
      _
    // Predicated region
    $region10: #{tpu_custom_call.1} parent=1 // pred_check
      _
    $region11: #{tpu_custom_call.1} parent=1 // pred_check_branch
      %25 = sbr.rel (0) target = $region13
    $region12: #{tpu_custom_call.1} parent=1 // pred_region
      _
    $region13: #{tpu_custom_call.1} parent=1 // pred_fallthru
      _
    // Predicated region
    $region14: #{tpu_custom_call.1} parent=1 // pred_check
      _
    $region15: #{tpu_custom_call.1} parent=1 // pred_check_branch
      %27 = sbr.rel (0) target = $region17
    $region16: #{tpu_custom_call.1} parent=1 // pred_region
      %28 = dma.done [#allocation3], 29184
    $region17: #{tpu_custom_call.1} parent=1 // pred_fallthru
      _
    %v30 = vld [vmem:[%s0] sm:$0xff]
    %v31 = vld [vmem:[%s0 + $0x8] sm:$0xff]
    %v32 = vld [vmem:[%s0 + $0x10] sm:$0xff]
    %v33 = vld [vmem:[%s0 + $0x18] sm:$0xff]
    %v34 = vld [vmem:[%s0 + $0x20] sm:$0xff]
    %v35 = vld [vmem:[%s0 + $0x28] sm:$0xff]
    %v36 = vld [vmem:[%s0 + $0x30] sm:$0xff]
    %v37 = vld [vmem:[%s0 + $0x38] sm:$0xff]
    %v38 = vld [vmem:[#allocation2] sm:$0xff]
    %v39 = vld [vmem:[#allocation2 + $0x8] sm:$0xff]
    %v40 = vld [vmem:[#allocation2 + $0x10] sm:$0xff]
    %v41 = vld [vmem:[#allocation2 + $0x18] sm:$0xff]
    %v42 = vld [vmem:[#allocation2 + $0x20] sm:$0xff]
    %v43 = vld [vmem:[#allocation2 + $0x28] sm:$0xff]
    %v44 = vld [vmem:[#allocation2 + $0x30] sm:$0xff]
    %v45 = vld [vmem:[#allocation2 + $0x38] sm:$0xff]
    %v46 = vld [vmem:[#allocation2 + $0x40] sm:$0xff]
    %v47 = vld [vmem:[#allocation2 + $0x48] sm:$0xff]
    %v48 = vld [vmem:[#allocation2 + $0x50] sm:$0xff]
    %v49 = vld [vmem:[#allocation2 + $0x58] sm:$0xff]
    %v50 = vld [vmem:[#allocation2 + $0x60] sm:$0xff]
    %v51 = vld [vmem:[#allocation2 + $0x68] sm:$0xff]
    %v52 = vld [vmem:[#allocation2 + $0x70] sm:$0xff]
    %v53 = vld [vmem:[#allocation2 + $0x78] sm:$0xff]
    %v54 = vld [vmem:[#allocation2 + $0x80] sm:$0xff]
    %v55 = vld [vmem:[#allocation2 + $0x88] sm:$0xff]
    %v56 = vld [vmem:[#allocation2 + $0x90] sm:$0xff]
    %v57 = vld [vmem:[#allocation2 + $0x98] sm:$0xff]
    %v58 = vld [vmem:[#allocation2 + $0xa0] sm:$0xff]
    %v59 = vld [vmem:[#allocation2 + $0xa8] sm:$0xff]
    %v60 = vld [vmem:[#allocation2 + $0xb0] sm:$0xff]
    %v61 = vld [vmem:[#allocation2 + $0xb8] sm:$0xff]
    %v62 = vld [vmem:[#allocation2 + $0xc0] sm:$0xff]
    %v63 = vld [vmem:[#allocation2 + $0xc8] sm:$0xff]
    %v64 = vld [vmem:[#allocation2 + $0xd0] sm:$0xff]
    %v65 = vld [vmem:[#allocation2 + $0xd8] sm:$0xff]
    %v66 = vld [vmem:[#allocation2 + $0xe0] sm:$0xff]
    %v67 = vld [vmem:[#allocation2 + $0xe8] sm:$0xff]
    %v68 = vld [vmem:[#allocation2 + $0xf0] sm:$0xff]
    %v69 = vld [vmem:[#allocation2 + $0xf8] sm:$0xff]
    %v70 = vld [vmem:[#allocation2 + $0x100] sm:$0xff]
    %v71 = vld [vmem:[#allocation2 + $0x108] sm:$0xff]
    %v72 = vld [vmem:[#allocation2 + $0x110] sm:$0xff]
    %v73 = vld [vmem:[#allocation2 + $0x118] sm:$0xff]
    %v74 = vld [vmem:[#allocation2 + $0x120] sm:$0xff]
    %v75 = vld [vmem:[#allocation2 + $0x128] sm:$0xff]
    %v76 = vld [vmem:[#allocation2 + $0x130] sm:$0xff]
    %v77 = vld [vmem:[#allocation2 + $0x138] sm:$0xff]
    %v78 = vld [vmem:[#allocation2 + $0x140] sm:$0xff]
    %v79 = vld [vmem:[#allocation2 + $0x148] sm:$0xff]
    %v80 = vld [vmem:[#allocation2 + $0x150] sm:$0xff]
    %v81 = vld [vmem:[#allocation2 + $0x158] sm:$0xff]
    %v82 = vld [vmem:[#allocation2 + $0x160] sm:$0xff]
    %v83 = vld [vmem:[#allocation2 + $0x168] sm:$0xff]
    %v84 = vld [vmem:[#allocation2 + $0x170] sm:$0xff]
    %v85 = vld [vmem:[#allocation2 + $0x178] sm:$0xff]
    %v86 = vld [vmem:[#allocation2 + $0x180] sm:$0xff]
    %v87 = vld [vmem:[#allocation2 + $0x188] sm:$0xff]
    %v88 = vld [vmem:[#allocation2 + $0x190] sm:$0xff]
    %v89 = vld [vmem:[#allocation2 + $0x198] sm:$0xff]
    %v90 = vld [vmem:[#allocation2 + $0x1a0] sm:$0xff]
    %v91 = vld [vmem:[#allocation2 + $0x1a8] sm:$0xff]
    %v92 = vld [vmem:[#allocation2 + $0x1b0] sm:$0xff]
    %v93 = vld [vmem:[#allocation2 + $0x1b8] sm:$0xff]
    %v94 = vld [vmem:[#allocation2 + $0x1c0] sm:$0xff]
    %v95 = vld [vmem:[#allocation2 + $0x1c8] sm:$0xff]
    %v96 = vld [vmem:[#allocation2 + $0x1d0] sm:$0xff]
    %v97 = vld [vmem:[#allocation2 + $0x1d8] sm:$0xff]
    %v98 = vld [vmem:[#allocation2 + $0x1e0] sm:$0xff]
    %v99 = vld [vmem:[#allocation2 + $0x1e8] sm:$0xff]
    %v100 = vld [vmem:[#allocation2 + $0x1f0] sm:$0xff]
    %v101 = vld [vmem:[#allocation2 + $0x1f8] sm:$0xff]
    %v102 = vld [vmem:[#allocation2 + $0x200] sm:$0xff]
    %v103 = vld [vmem:[#allocation2 + $0x208] sm:$0xff]
    %v104 = vld [vmem:[#allocation2 + $0x210] sm:$0xff]
    %v105 = vld [vmem:[#allocation2 + $0x218] sm:$0xff]
    %v106 = vld [vmem:[#allocation2 + $0x220] sm:$0xff]
    %v107 = vld [vmem:[#allocation2 + $0x228] sm:$0xff]
    %v108 = vld [vmem:[#allocation2 + $0x230] sm:$0xff]
    %v109 = vld [vmem:[#allocation2 + $0x238] sm:$0xff]
    %v110 = vld [vmem:[#allocation2 + $0x240] sm:$0xff]
    %v111 = vld [vmem:[#allocation2 + $0x248] sm:$0xff]
    %v112 = vld [vmem:[#allocation2 + $0x250] sm:$0xff]
    %v113 = vld [vmem:[#allocation2 + $0x258] sm:$0xff]
    %v114 = vld [vmem:[#allocation2 + $0x260] sm:$0xff]
    %v115 = vld [vmem:[#allocation2 + $0x268] sm:$0xff]
    %v116 = vld [vmem:[#allocation2 + $0x270] sm:$0xff]
    %v117 = vld [vmem:[#allocation2 + $0x278] sm:$0xff]
    %v118 = vld [vmem:[#allocation2 + $0x280] sm:$0xff]
    %v119 = vld [vmem:[#allocation2 + $0x288] sm:$0xff]
    %v120 = vld [vmem:[#allocation2 + $0x290] sm:$0xff]
    %v121 = vld [vmem:[#allocation2 + $0x298] sm:$0xff]
    %v122 = vld [vmem:[#allocation2 + $0x2a0] sm:$0xff]
    %v123 = vld [vmem:[#allocation2 + $0x2a8] sm:$0xff]
    %v124 = vld [vmem:[#allocation2 + $0x2b0] sm:$0xff]
    %v125 = vld [vmem:[#allocation2 + $0x2b8] sm:$0xff]
    %v126 = vld [vmem:[#allocation2 + $0x2c0] sm:$0xff]
    %v127 = vld [vmem:[#allocation2 + $0x2c8] sm:$0xff]
    %v128 = vld [vmem:[#allocation2 + $0x2d0] sm:$0xff]
    %v129 = vld [vmem:[#allocation2 + $0x2d8] sm:$0xff]
    %v130 = vld [vmem:[#allocation2 + $0x2e0] sm:$0xff]
    %v131 = vld [vmem:[#allocation2 + $0x2e8] sm:$0xff]
    %v132 = vld [vmem:[#allocation2 + $0x2f0] sm:$0xff]
    %v133 = vld [vmem:[#allocation2 + $0x2f8] sm:$0xff]
    %v134 = vld [vmem:[#allocation2 + $0x300] sm:$0xff]
    %v135 = vld [vmem:[#allocation2 + $0x308] sm:$0xff]
    %v136 = vld [vmem:[#allocation2 + $0x310] sm:$0xff]
    %v137 = vld [vmem:[#allocation2 + $0x318] sm:$0xff]
    %v138 = vld [vmem:[#allocation2 + $0x320] sm:$0xff]
    %v139 = vld [vmem:[#allocation2 + $0x328] sm:$0xff]
    %v140 = vld [vmem:[#allocation2 + $0x330] sm:$0xff]
    %v141 = vld [vmem:[#allocation2 + $0x338] sm:$0xff]
    %v142 = vld [vmem:[#allocation2 + $0x340] sm:$0xff]
    %v143 = vld [vmem:[#allocation2 + $0x348] sm:$0xff]
    %v144 = vld [vmem:[#allocation2 + $0x350] sm:$0xff]
    %v145 = vld [vmem:[#allocation2 + $0x358] sm:$0xff]
    %v146 = vld [vmem:[#allocation2 + $0x360] sm:$0xff]
    %v147 = vld [vmem:[#allocation2 + $0x368] sm:$0xff]
    %v148 = vld [vmem:[#allocation2 + $0x370] sm:$0xff]
    %v149 = vld [vmem:[#allocation2 + $0x378] sm:$0xff]
    %v150 = vld [vmem:[#allocation2 + $0x380] sm:$0xff]
    %v151 = vld [vmem:[#allocation2 + $0x388] sm:$0xff]
    %v152 = vld [vmem:[#allocation2 + $0x390] sm:$0xff]
    %v153 = vld [vmem:[#allocation2 + $0x398] sm:$0xff]
    %v154 = vld [vmem:[#allocation2 + $0x3a0] sm:$0xff]
    %v155 = vld [vmem:[#allocation2 + $0x3a8] sm:$0xff]
    %v156 = vld [vmem:[#allocation2 + $0x3b0] sm:$0xff]
    %v157 = vld [vmem:[#allocation2 + $0x3b8] sm:$0xff]
    %v158 = vld [vmem:[#allocation2 + $0x3c0] sm:$0xff]
    %v159 = vld [vmem:[#allocation2 + $0x3c8] sm:$0xff]
    %v160 = vld [vmem:[#allocation2 + $0x3d0] sm:$0xff]
    %v161 = vld [vmem:[#allocation2 + $0x3d8] sm:$0xff]
    %v162 = vld [vmem:[#allocation2 + $0x3e0] sm:$0xff]
    %v163 = vld [vmem:[#allocation2 + $0x3e8] sm:$0xff]
    %v164 = vld [vmem:[#allocation2 + $0x3f0] sm:$0xff]
    %v165 = vld [vmem:[#allocation2 + $0x3f8] sm:$0xff]
    %v166 = vld [vmem:[#allocation2 + $0x400] sm:$0xff]
    %v167 = vld [vmem:[#allocation2 + $0x408] sm:$0xff]
    %v168 = vld [vmem:[#allocation2 + $0x410] sm:$0xff]
    %v169 = vld [vmem:[#allocation2 + $0x418] sm:$0xff]
    %v170 = vld [vmem:[#allocation2 + $0x420] sm:$0xff]
    %v171 = vld [vmem:[#allocation2 + $0x428] sm:$0xff]
    %v172 = vld [vmem:[#allocation2 + $0x430] sm:$0xff]
    %v173 = vld [vmem:[#allocation2 + $0x438] sm:$0xff]
    %v174 = vld [vmem:[#allocation2 + $0x440] sm:$0xff]
    %v175 = vld [vmem:[#allocation2 + $0x448] sm:$0xff]
    %v176 = vld [vmem:[#allocation2 + $0x450] sm:$0xff]
    %v177 = vld [vmem:[#allocation2 + $0x458] sm:$0xff]
    %v178 = vld [vmem:[#allocation2 + $0x460] sm:$0xff]
    %v179 = vld [vmem:[#allocation2 + $0x468] sm:$0xff]
    %v180 = vld [vmem:[#allocation2 + $0x470] sm:$0xff]
    %v181 = vld [vmem:[#allocation2 + $0x478] sm:$0xff]
    %v182 = vld [vmem:[#allocation2 + $0x480] sm:$0xff]
    %v183 = vld [vmem:[#allocation2 + $0x488] sm:$0xff]
    %v184 = vld [vmem:[#allocation2 + $0x490] sm:$0xff]
    %v185 = vld [vmem:[#allocation2 + $0x498] sm:$0xff]
    %v186 = vld [vmem:[#allocation2 + $0x4a0] sm:$0xff]
    %v187 = vld [vmem:[#allocation2 + $0x4a8] sm:$0xff]
    %v188 = vld [vmem:[#allocation2 + $0x4b0] sm:$0xff]
    %v189 = vld [vmem:[#allocation2 + $0x4b8] sm:$0xff]
    %v190 = vld [vmem:[#allocation2 + $0x4c0] sm:$0xff]
    %v191 = vld [vmem:[#allocation2 + $0x4c8] sm:$0xff]
    %v192 = vld [vmem:[#allocation2 + $0x4d0] sm:$0xff]
    %v193 = vld [vmem:[#allocation2 + $0x4d8] sm:$0xff]
    %v194 = vld [vmem:[#allocation2 + $0x4e0] sm:$0xff]
    %v195 = vld [vmem:[#allocation2 + $0x4e8] sm:$0xff]
    %v196 = vld [vmem:[#allocation2 + $0x4f0] sm:$0xff]
    %v197 = vld [vmem:[#allocation2 + $0x4f8] sm:$0xff]
    %v198 = vld [vmem:[#allocation2 + $0x500] sm:$0xff]
    %v199 = vld [vmem:[#allocation2 + $0x508] sm:$0xff]
    %v200 = vld [vmem:[#allocation2 + $0x510] sm:$0xff]
    %v201 = vld [vmem:[#allocation2 + $0x518] sm:$0xff]
    %v202 = vld [vmem:[#allocation2 + $0x520] sm:$0xff]
    %v203 = vld [vmem:[#allocation2 + $0x528] sm:$0xff]
    %v204 = vld [vmem:[#allocation2 + $0x530] sm:$0xff]
    %v205 = vld [vmem:[#allocation2 + $0x538] sm:$0xff]
    %v206 = vld [vmem:[#allocation2 + $0x540] sm:$0xff]
    %v207 = vld [vmem:[#allocation2 + $0x548] sm:$0xff]
    %v208 = vld [vmem:[#allocation2 + $0x550] sm:$0xff]
    %v209 = vld [vmem:[#allocation2 + $0x558] sm:$0xff]
    %v210 = vld [vmem:[#allocation2 + $0x560] sm:$0xff]
    %v211 = vld [vmem:[#allocation2 + $0x568] sm:$0xff]
    %v212 = vld [vmem:[#allocation2 + $0x570] sm:$0xff]
    %v213 = vld [vmem:[#allocation2 + $0x578] sm:$0xff]
    %v214 = vld [vmem:[#allocation2 + $0x580] sm:$0xff]
    %v215 = vld [vmem:[#allocation2 + $0x588] sm:$0xff]
    %v216 = vld [vmem:[#allocation2 + $0x590] sm:$0xff]
    %v217 = vld [vmem:[#allocation2 + $0x598] sm:$0xff]
    %v218 = vld [vmem:[#allocation2 + $0x5a0] sm:$0xff]
    %v219 = vld [vmem:[#allocation2 + $0x5a8] sm:$0xff]
    %v220 = vld [vmem:[#allocation2 + $0x5b0] sm:$0xff]
    %v221 = vld [vmem:[#allocation2 + $0x5b8] sm:$0xff]
    %v222 = vld [vmem:[#allocation2 + $0x5c0] sm:$0xff]
    %v223 = vld [vmem:[#allocation2 + $0x5c8] sm:$0xff]
    %v224 = vld [vmem:[#allocation2 + $0x5d0] sm:$0xff]
    %v225 = vld [vmem:[#allocation2 + $0x5d8] sm:$0xff]
    %v226 = vld [vmem:[#allocation2 + $0x5e0] sm:$0xff]
    %v227 = vld [vmem:[#allocation2 + $0x5e8] sm:$0xff]
    %v228 = vld [vmem:[#allocation2 + $0x5f0] sm:$0xff]
    %v229 = vld [vmem:[#allocation2 + $0x5f8] sm:$0xff]
    %v230 = vld [vmem:[#allocation2 + $0x600] sm:$0xff]
    %v231 = vld [vmem:[#allocation2 + $0x608] sm:$0xff]
    %v232 = vld [vmem:[#allocation2 + $0x610] sm:$0xff]
    %v233 = vld [vmem:[#allocation2 + $0x618] sm:$0xff]
    %v234 = vld [vmem:[#allocation2 + $0x620] sm:$0xff]
    %v235 = vld [vmem:[#allocation2 + $0x628] sm:$0xff]
    %v236 = vld [vmem:[#allocation2 + $0x630] sm:$0xff]
    %v237 = vld [vmem:[#allocation2 + $0x638] sm:$0xff]
    %v238 = vld [vmem:[#allocation2 + $0x640] sm:$0xff]
    %v239 = vld [vmem:[#allocation2 + $0x648] sm:$0xff]
    %v240 = vld [vmem:[#allocation2 + $0x650] sm:$0xff]
    %v241 = vld [vmem:[#allocation2 + $0x658] sm:$0xff]
    %v242 = vld [vmem:[#allocation2 + $0x660] sm:$0xff]
    %v243 = vld [vmem:[#allocation2 + $0x668] sm:$0xff]
    %v244 = vld [vmem:[#allocation2 + $0x670] sm:$0xff]
    %v245 = vld [vmem:[#allocation2 + $0x678] sm:$0xff]
    %v246 = vld [vmem:[#allocation2 + $0x680] sm:$0xff]
    %v247 = vld [vmem:[#allocation2 + $0x688] sm:$0xff]
    %v248 = vld [vmem:[#allocation2 + $0x690] sm:$0xff]
    %v249 = vld [vmem:[#allocation2 + $0x698] sm:$0xff]
    %v250 = vld [vmem:[#allocation2 + $0x6a0] sm:$0xff]
    %v251 = vld [vmem:[#allocation2 + $0x6a8] sm:$0xff]
    %v252 = vld [vmem:[#allocation2 + $0x6b0] sm:$0xff]
    %v253 = vld [vmem:[#allocation2 + $0x6b8] sm:$0xff]
    %v254 = vld [vmem:[#allocation2 + $0x6c0] sm:$0x33]
    %v255 = vld [vmem:[#allocation2 + $0x6c8] sm:$0x33]
    %v256 = vld [vmem:[#allocation2 + $0x6d0] sm:$0x33]
    %v257 = vld [vmem:[#allocation2 + $0x6d8] sm:$0x33]
    %v258 = vld [vmem:[#allocation2 + $0x6e0] sm:$0x33]
    %v259 = vld [vmem:[#allocation2 + $0x6e8] sm:$0x33]
    %v260 = vld [vmem:[#allocation2 + $0x6f0] sm:$0x33]
    %v261 = vld [vmem:[#allocation2 + $0x6f8] sm:$0x33]
    %v262 = vld [vmem:[#allocation2 + $0x700] sm:$0x33]
    %v263 = vld [vmem:[#allocation2 + $0x708] sm:$0x33]
    %v264 = vld [vmem:[#allocation2 + $0x710] sm:$0x33]
    %v265 = vld [vmem:[#allocation2 + $0x718] sm:$0x33]
    %v266 = vld [vmem:[%s2] sm:$0xff]
    %v267 = vld [vmem:[%s2 + $0x8] sm:$0xff]
    %v268 = vld [vmem:[%s2 + $0x10] sm:$0xff]
    %v269 = vld [vmem:[%s2 + $0x18] sm:$0xff]
    %v270 = vld [vmem:[%s2 + $0x20] sm:$0xff]
    %v271 = vld [vmem:[%s2 + $0x28] sm:$0xff]
    %v272 = vld [vmem:[%s2 + $0x30] sm:$0xff]
    %v273 = vld [vmem:[%s2 + $0x38] sm:$0xff]
    %275 = vset.pattern.permute.xlu0 0
    %276 = vperm.xlu0 %275, %v266
    %v277 = vpop.permute.xlu0 %276
    %280 = vset.pattern.permute.xlu0 0
    %281 = vperm.xlu0 %280, %v267
    %v282 = vpop.permute.xlu0 %281
    %285 = vset.pattern.permute.xlu0 0
    %286 = vperm.xlu0 %285, %v268
    %v287 = vpop.permute.xlu0 %286
    %290 = vset.pattern.permute.xlu0 0
    %291 = vperm.xlu0 %290, %v269
    %v292 = vpop.permute.xlu0 %291
    %295 = vset.pattern.permute.xlu0 0
    %296 = vperm.xlu0 %295, %v270
    %v297 = vpop.permute.xlu0 %296
    %300 = vset.pattern.permute.xlu0 0
    %301 = vperm.xlu0 %300, %v271
    %v302 = vpop.permute.xlu0 %301
    %305 = vset.pattern.permute.xlu0 0
    %306 = vperm.xlu0 %305, %v272
    %v307 = vpop.permute.xlu0 %306
    %310 = vset.pattern.permute.xlu0 0
    %311 = vperm.xlu0 %310, %v273
    %v312 = vpop.permute.xlu0 %311
    %v322 = vunpack.c.l.b16 %v30
    %v323 = vunpack.c.h.b16 %v30
    %v324 = vunpack.c.l.b16 %v31
    %v325 = vunpack.c.h.b16 %v31
    %v326 = vunpack.c.l.b16 %v32
    %v327 = vunpack.c.h.b16 %v32
    %v328 = vunpack.c.l.b16 %v33
    %v329 = vunpack.c.h.b16 %v33
    %v330 = vunpack.c.l.b16 %v34
    %v331 = vunpack.c.h.b16 %v34
    %v332 = vunpack.c.l.b16 %v35
    %v333 = vunpack.c.h.b16 %v35
    %v334 = vunpack.c.l.b16 %v36
    %v335 = vunpack.c.h.b16 %v36
    %v336 = vunpack.c.l.b16 %v37
    %v337 = vunpack.c.h.b16 %v37
    %v338 = vpack.c.b16 %v324, %v322
    %v339 = vpack.c.b16 %v325, %v323
    %v340 = vpack.c.b16 %v328, %v326
    %v341 = vpack.c.b16 %v329, %v327
    %v342 = vpack.c.b16 %v332, %v330
    %v343 = vpack.c.b16 %v333, %v331
    %v344 = vpack.c.b16 %v336, %v334
    %v345 = vpack.c.b16 %v337, %v335
    %v578 = vunpack.c.l.b16 %v38
    %v579 = vunpack.c.h.b16 %v38
    %v580 = vunpack.c.l.b16 %v39
    %v581 = vunpack.c.h.b16 %v39
    %v582 = vunpack.c.l.b16 %v40
    %v583 = vunpack.c.h.b16 %v40
    %v584 = vunpack.c.l.b16 %v41
    %v585 = vunpack.c.h.b16 %v41
    %v586 = vunpack.c.l.b16 %v42
    %v587 = vunpack.c.h.b16 %v42
    %v588 = vunpack.c.l.b16 %v43
    %v589 = vunpack.c.h.b16 %v43
    %v590 = vunpack.c.l.b16 %v44
    %v591 = vunpack.c.h.b16 %v44
    %v592 = vunpack.c.l.b16 %v45
    %v593 = vunpack.c.h.b16 %v45
    %v594 = vunpack.c.l.b16 %v46
    %v595 = vunpack.c.h.b16 %v46
    %v596 = vunpack.c.l.b16 %v47
    %v597 = vunpack.c.h.b16 %v47
    %v598 = vunpack.c.l.b16 %v48
    %v599 = vunpack.c.h.b16 %v48
    %v600 = vunpack.c.l.b16 %v49
    %v601 = vunpack.c.h.b16 %v49
    %v602 = vunpack.c.l.b16 %v50
    %v603 = vunpack.c.h.b16 %v50
    %v604 = vunpack.c.l.b16 %v51
    %v605 = vunpack.c.h.b16 %v51
    %v606 = vunpack.c.l.b16 %v52
    %v607 = vunpack.c.h.b16 %v52
    %v608 = vunpack.c.l.b16 %v53
    %v609 = vunpack.c.h.b16 %v53
    %v610 = vunpack.c.l.b16 %v54
    %v611 = vunpack.c.h.b16 %v54
    %v612 = vunpack.c.l.b16 %v55
    %v613 = vunpack.c.h.b16 %v55
    %v614 = vunpack.c.l.b16 %v56
    %v615 = vunpack.c.h.b16 %v56
    %v616 = vunpack.c.l.b16 %v57
    %v617 = vunpack.c.h.b16 %v57
    %v618 = vunpack.c.l.b16 %v58
    %v619 = vunpack.c.h.b16 %v58
    %v620 = vunpack.c.l.b16 %v59
    %v621 = vunpack.c.h.b16 %v59
    %v622 = vunpack.c.l.b16 %v60
    %v623 = vunpack.c.h.b16 %v60
    %v624 = vunpack.c.l.b16 %v61
    %v625 = vunpack.c.h.b16 %v61
    %v626 = vunpack.c.l.b16 %v62
    %v627 = vunpack.c.h.b16 %v62
    %v628 = vunpack.c.l.b16 %v63
    %v629 = vunpack.c.h.b16 %v63
    %v630 = vunpack.c.l.b16 %v64
    %v631 = vunpack.c.h.b16 %v64
    %v632 = vunpack.c.l.b16 %v65
    %v633 = vunpack.c.h.b16 %v65
    %v634 = vunpack.c.l.b16 %v66
    %v635 = vunpack.c.h.b16 %v66
    %v636 = vunpack.c.l.b16 %v67
    %v637 = vunpack.c.h.b16 %v67
    %v638 = vunpack.c.l.b16 %v68
    %v639 = vunpack.c.h.b16 %v68
    %v640 = vunpack.c.l.b16 %v69
    %v641 = vunpack.c.h.b16 %v69
    %v642 = vunpack.c.l.b16 %v70
    %v643 = vunpack.c.h.b16 %v70
    %v644 = vunpack.c.l.b16 %v71
    %v645 = vunpack.c.h.b16 %v71
    %v646 = vunpack.c.l.b16 %v72
    %v647 = vunpack.c.h.b16 %v72
    %v648 = vunpack.c.l.b16 %v73
    %v649 = vunpack.c.h.b16 %v73
    %v650 = vunpack.c.l.b16 %v74
    %v651 = vunpack.c.h.b16 %v74
    %v652 = vunpack.c.l.b16 %v75
    %v653 = vunpack.c.h.b16 %v75
    %v654 = vunpack.c.l.b16 %v76
    %v655 = vunpack.c.h.b16 %v76
    %v656 = vunpack.c.l.b16 %v77
    %v657 = vunpack.c.h.b16 %v77
    %v658 = vunpack.c.l.b16 %v78
    %v659 = vunpack.c.h.b16 %v78
    %v660 = vunpack.c.l.b16 %v79
    %v661 = vunpack.c.h.b16 %v79
    %v662 = vunpack.c.l.b16 %v80
    %v663 = vunpack.c.h.b16 %v80
    %v664 = vunpack.c.l.b16 %v81
    %v665 = vunpack.c.h.b16 %v81
    %v666 = vunpack.c.l.b16 %v82
    %v667 = vunpack.c.h.b16 %v82
    %v668 = vunpack.c.l.b16 %v83
    %v669 = vunpack.c.h.b16 %v83
    %v670 = vunpack.c.l.b16 %v84
    %v671 = vunpack.c.h.b16 %v84
    %v672 = vunpack.c.l.b16 %v85
    %v673 = vunpack.c.h.b16 %v85
    %v674 = vunpack.c.l.b16 %v86
    %v675 = vunpack.c.h.b16 %v86
    %v676 = vunpack.c.l.b16 %v87
    %v677 = vunpack.c.h.b16 %v87
    %v678 = vunpack.c.l.b16 %v88
    %v679 = vunpack.c.h.b16 %v88
    %v680 = vunpack.c.l.b16 %v89
    %v681 = vunpack.c.h.b16 %v89
    %v682 = vunpack.c.l.b16 %v90
    %v683 = vunpack.c.h.b16 %v90
    %v684 = vunpack.c.l.b16 %v91
    %v685 = vunpack.c.h.b16 %v91
    %v686 = vunpack.c.l.b16 %v92
    %v687 = vunpack.c.h.b16 %v92
    %v688 = vunpack.c.l.b16 %v93
    %v689 = vunpack.c.h.b16 %v93
    %v690 = vunpack.c.l.b16 %v94
    %v691 = vunpack.c.h.b16 %v94
    %v692 = vunpack.c.l.b16 %v95
    %v693 = vunpack.c.h.b16 %v95
    %v694 = vunpack.c.l.b16 %v96
    %v695 = vunpack.c.h.b16 %v96
    %v696 = vunpack.c.l.b16 %v97
    %v697 = vunpack.c.h.b16 %v97
    %v698 = vunpack.c.l.b16 %v98
    %v699 = vunpack.c.h.b16 %v98
    %v700 = vunpack.c.l.b16 %v99
    %v701 = vunpack.c.h.b16 %v99
    %v702 = vunpack.c.l.b16 %v100
    %v703 = vunpack.c.h.b16 %v100
    %v704 = vunpack.c.l.b16 %v101
    %v705 = vunpack.c.h.b16 %v101
    %v706 = vunpack.c.l.b16 %v102
    %v707 = vunpack.c.h.b16 %v102
    %v708 = vunpack.c.l.b16 %v103
    %v709 = vunpack.c.h.b16 %v103
    %v710 = vunpack.c.l.b16 %v104
    %v711 = vunpack.c.h.b16 %v104
    %v712 = vunpack.c.l.b16 %v105
    %v713 = vunpack.c.h.b16 %v105
    %v714 = vunpack.c.l.b16 %v106
    %v715 = vunpack.c.h.b16 %v106
    %v716 = vunpack.c.l.b16 %v107
    %v717 = vunpack.c.h.b16 %v107
    %v718 = vunpack.c.l.b16 %v108
    %v719 = vunpack.c.h.b16 %v108
    %v720 = vunpack.c.l.b16 %v109
    %v721 = vunpack.c.h.b16 %v109
    %v722 = vunpack.c.l.b16 %v110
    %v723 = vunpack.c.h.b16 %v110
    %v724 = vunpack.c.l.b16 %v111
    %v725 = vunpack.c.h.b16 %v111
    %v726 = vunpack.c.l.b16 %v112
    %v727 = vunpack.c.h.b16 %v112
    %v728 = vunpack.c.l.b16 %v113
    %v729 = vunpack.c.h.b16 %v113
    %v730 = vunpack.c.l.b16 %v114
    %v731 = vunpack.c.h.b16 %v114
    %v732 = vunpack.c.l.b16 %v115
    %v733 = vunpack.c.h.b16 %v115
    %v734 = vunpack.c.l.b16 %v116
    %v735 = vunpack.c.h.b16 %v116
    %v736 = vunpack.c.l.b16 %v117
    %v737 = vunpack.c.h.b16 %v117
    %v738 = vunpack.c.l.b16 %v118
    %v739 = vunpack.c.h.b16 %v118
    %v740 = vunpack.c.l.b16 %v119
    %v741 = vunpack.c.h.b16 %v119
    %v742 = vunpack.c.l.b16 %v120
    %v743 = vunpack.c.h.b16 %v120
    %v744 = vunpack.c.l.b16 %v121
    %v745 = vunpack.c.h.b16 %v121
    %v746 = vunpack.c.l.b16 %v122
    %v747 = vunpack.c.h.b16 %v122
    %v748 = vunpack.c.l.b16 %v123
    %v749 = vunpack.c.h.b16 %v123
    %v750 = vunpack.c.l.b16 %v124
    %v751 = vunpack.c.h.b16 %v124
    %v752 = vunpack.c.l.b16 %v125
    %v753 = vunpack.c.h.b16 %v125
    %v754 = vunpack.c.l.b16 %v126
    %v755 = vunpack.c.h.b16 %v126
    %v756 = vunpack.c.l.b16 %v127
    %v757 = vunpack.c.h.b16 %v127
    %v758 = vunpack.c.l.b16 %v128
    %v759 = vunpack.c.h.b16 %v128
    %v760 = vunpack.c.l.b16 %v129
    %v761 = vunpack.c.h.b16 %v129
    %v762 = vunpack.c.l.b16 %v130
    %v763 = vunpack.c.h.b16 %v130
    %v764 = vunpack.c.l.b16 %v131
    %v765 = vunpack.c.h.b16 %v131
    %v766 = vunpack.c.l.b16 %v132
    %v767 = vunpack.c.h.b16 %v132
    %v768 = vunpack.c.l.b16 %v133
    %v769 = vunpack.c.h.b16 %v133
    %v770 = vunpack.c.l.b16 %v134
    %v771 = vunpack.c.h.b16 %v134
    %v772 = vunpack.c.l.b16 %v135
    %v773 = vunpack.c.h.b16 %v135
    %v774 = vunpack.c.l.b16 %v136
    %v775 = vunpack.c.h.b16 %v136
    %v776 = vunpack.c.l.b16 %v137
    %v777 = vunpack.c.h.b16 %v137
    %v778 = vunpack.c.l.b16 %v138
    %v779 = vunpack.c.h.b16 %v138
    %v780 = vunpack.c.l.b16 %v139
    %v781 = vunpack.c.h.b16 %v139
    %v782 = vunpack.c.l.b16 %v140
    %v783 = vunpack.c.h.b16 %v140
    %v784 = vunpack.c.l.b16 %v141
    %v785 = vunpack.c.h.b16 %v141
    %v786 = vunpack.c.l.b16 %v142
    %v787 = vunpack.c.h.b16 %v142
    %v788 = vunpack.c.l.b16 %v143
    %v789 = vunpack.c.h.b16 %v143
    %v790 = vunpack.c.l.b16 %v144
    %v791 = vunpack.c.h.b16 %v144
    %v792 = vunpack.c.l.b16 %v145
    %v793 = vunpack.c.h.b16 %v145
    %v794 = vunpack.c.l.b16 %v146
    %v795 = vunpack.c.h.b16 %v146
    %v796 = vunpack.c.l.b16 %v147
    %v797 = vunpack.c.h.b16 %v147
    %v798 = vunpack.c.l.b16 %v148
    %v799 = vunpack.c.h.b16 %v148
    %v800 = vunpack.c.l.b16 %v149
    %v801 = vunpack.c.h.b16 %v149
    %v802 = vunpack.c.l.b16 %v150
    %v803 = vunpack.c.h.b16 %v150
    %v804 = vunpack.c.l.b16 %v151
    %v805 = vunpack.c.h.b16 %v151
    %v806 = vunpack.c.l.b16 %v152
    %v807 = vunpack.c.h.b16 %v152
    %v808 = vunpack.c.l.b16 %v153
    %v809 = vunpack.c.h.b16 %v153
    %v810 = vunpack.c.l.b16 %v154
    %v811 = vunpack.c.h.b16 %v154
    %v812 = vunpack.c.l.b16 %v155
    %v813 = vunpack.c.h.b16 %v155
    %v814 = vunpack.c.l.b16 %v156
    %v815 = vunpack.c.h.b16 %v156
    %v816 = vunpack.c.l.b16 %v157
    %v817 = vunpack.c.h.b16 %v157
    %v818 = vunpack.c.l.b16 %v158
    %v819 = vunpack.c.h.b16 %v158
    %v820 = vunpack.c.l.b16 %v159
    %v821 = vunpack.c.h.b16 %v159
    %v822 = vunpack.c.l.b16 %v160
    %v823 = vunpack.c.h.b16 %v160
    %v824 = vunpack.c.l.b16 %v161
    %v825 = vunpack.c.h.b16 %v161
    %v826 = vunpack.c.l.b16 %v162
    %v827 = vunpack.c.h.b16 %v162
    %v828 = vunpack.c.l.b16 %v163
    %v829 = vunpack.c.h.b16 %v163
    %v830 = vunpack.c.l.b16 %v164
    %v831 = vunpack.c.h.b16 %v164
    %v832 = vunpack.c.l.b16 %v165
    %v833 = vunpack.c.h.b16 %v165
    %v834 = vunpack.c.l.b16 %v166
    %v835 = vunpack.c.h.b16 %v166
    %v836 = vunpack.c.l.b16 %v167
    %v837 = vunpack.c.h.b16 %v167
    %v838 = vunpack.c.l.b16 %v168
    %v839 = vunpack.c.h.b16 %v168
    %v840 = vunpack.c.l.b16 %v169
    %v841 = vunpack.c.h.b16 %v169
    %v842 = vunpack.c.l.b16 %v170
    %v843 = vunpack.c.h.b16 %v170
    %v844 = vunpack.c.l.b16 %v171
    %v845 = vunpack.c.h.b16 %v171
    %v846 = vunpack.c.l.b16 %v172
    %v847 = vunpack.c.h.b16 %v172
    %v848 = vunpack.c.l.b16 %v173
    %v849 = vunpack.c.h.b16 %v173
    %v850 = vunpack.c.l.b16 %v174
    %v851 = vunpack.c.h.b16 %v174
    %v852 = vunpack.c.l.b16 %v175
    %v853 = vunpack.c.h.b16 %v175
    %v854 = vunpack.c.l.b16 %v176
    %v855 = vunpack.c.h.b16 %v176
    %v856 = vunpack.c.l.b16 %v177
    %v857 = vunpack.c.h.b16 %v177
    %v858 = vunpack.c.l.b16 %v178
    %v859 = vunpack.c.h.b16 %v178
    %v860 = vunpack.c.l.b16 %v179
    %v861 = vunpack.c.h.b16 %v179
    %v862 = vunpack.c.l.b16 %v180
    %v863 = vunpack.c.h.b16 %v180
    %v864 = vunpack.c.l.b16 %v181
    %v865 = vunpack.c.h.b16 %v181
    %v866 = vunpack.c.l.b16 %v182
    %v867 = vunpack.c.h.b16 %v182
    %v868 = vunpack.c.l.b16 %v183
    %v869 = vunpack.c.h.b16 %v183
    %v870 = vunpack.c.l.b16 %v184
    %v871 = vunpack.c.h.b16 %v184
    %v872 = vunpack.c.l.b16 %v185
    %v873 = vunpack.c.h.b16 %v185
    %v874 = vunpack.c.l.b16 %v186
    %v875 = vunpack.c.h.b16 %v186
    %v876 = vunpack.c.l.b16 %v187
    %v877 = vunpack.c.h.b16 %v187
    %v878 = vunpack.c.l.b16 %v188
    %v879 = vunpack.c.h.b16 %v188
    %v880 = vunpack.c.l.b16 %v189
    %v881 = vunpack.c.h.b16 %v189
    %v882 = vunpack.c.l.b16 %v190
    %v883 = vunpack.c.h.b16 %v190
    %v884 = vunpack.c.l.b16 %v191
    %v885 = vunpack.c.h.b16 %v191
    %v886 = vunpack.c.l.b16 %v192
    %v887 = vunpack.c.h.b16 %v192
    %v888 = vunpack.c.l.b16 %v193
    %v889 = vunpack.c.h.b16 %v193
    %v890 = vunpack.c.l.b16 %v194
    %v891 = vunpack.c.h.b16 %v194
    %v892 = vunpack.c.l.b16 %v195
    %v893 = vunpack.c.h.b16 %v195
    %v894 = vunpack.c.l.b16 %v196
    %v895 = vunpack.c.h.b16 %v196
    %v896 = vunpack.c.l.b16 %v197
    %v897 = vunpack.c.h.b16 %v197
    %v898 = vunpack.c.l.b16 %v198
    %v899 = vunpack.c.h.b16 %v198
    %v900 = vunpack.c.l.b16 %v199
    %v901 = vunpack.c.h.b16 %v199
    %v902 = vunpack.c.l.b16 %v200
    %v903 = vunpack.c.h.b16 %v200
    %v904 = vunpack.c.l.b16 %v201
    %v905 = vunpack.c.h.b16 %v201
    %v906 = vunpack.c.l.b16 %v202
    %v907 = vunpack.c.h.b16 %v202
    %v908 = vunpack.c.l.b16 %v203
    %v909 = vunpack.c.h.b16 %v203
    %v910 = vunpack.c.l.b16 %v204
    %v911 = vunpack.c.h.b16 %v204
    %v912 = vunpack.c.l.b16 %v205
    %v913 = vunpack.c.h.b16 %v205
    %v914 = vunpack.c.l.b16 %v206
    %v915 = vunpack.c.h.b16 %v206
    %v916 = vunpack.c.l.b16 %v207
    %v917 = vunpack.c.h.b16 %v207
    %v918 = vunpack.c.l.b16 %v208
    %v919 = vunpack.c.h.b16 %v208
    %v920 = vunpack.c.l.b16 %v209
    %v921 = vunpack.c.h.b16 %v209
    %v922 = vunpack.c.l.b16 %v210
    %v923 = vunpack.c.h.b16 %v210
    %v924 = vunpack.c.l.b16 %v211
    %v925 = vunpack.c.h.b16 %v211
    %v926 = vunpack.c.l.b16 %v212
    %v927 = vunpack.c.h.b16 %v212
    %v928 = vunpack.c.l.b16 %v213
    %v929 = vunpack.c.h.b16 %v213
    %v930 = vunpack.c.l.b16 %v214
    %v931 = vunpack.c.h.b16 %v214
    %v932 = vunpack.c.l.b16 %v215
    %v933 = vunpack.c.h.b16 %v215
    %v934 = vunpack.c.l.b16 %v216
    %v935 = vunpack.c.h.b16 %v216
    %v936 = vunpack.c.l.b16 %v217
    %v937 = vunpack.c.h.b16 %v217
    %v938 = vunpack.c.l.b16 %v218
    %v939 = vunpack.c.h.b16 %v218
    %v940 = vunpack.c.l.b16 %v219
    %v941 = vunpack.c.h.b16 %v219
    %v942 = vunpack.c.l.b16 %v220
    %v943 = vunpack.c.h.b16 %v220
    %v944 = vunpack.c.l.b16 %v221
    %v945 = vunpack.c.h.b16 %v221
    %v946 = vunpack.c.l.b16 %v222
    %v947 = vunpack.c.h.b16 %v222
    %v948 = vunpack.c.l.b16 %v223
    %v949 = vunpack.c.h.b16 %v223
    %v950 = vunpack.c.l.b16 %v224
    %v951 = vunpack.c.h.b16 %v224
    %v952 = vunpack.c.l.b16 %v225
    %v953 = vunpack.c.h.b16 %v225
    %v954 = vunpack.c.l.b16 %v226
    %v955 = vunpack.c.h.b16 %v226
    %v956 = vunpack.c.l.b16 %v227
    %v957 = vunpack.c.h.b16 %v227
    %v958 = vunpack.c.l.b16 %v228
    %v959 = vunpack.c.h.b16 %v228
    %v960 = vunpack.c.l.b16 %v229
    %v961 = vunpack.c.h.b16 %v229
    %v962 = vunpack.c.l.b16 %v230
    %v963 = vunpack.c.h.b16 %v230
    %v964 = vunpack.c.l.b16 %v231
    %v965 = vunpack.c.h.b16 %v231
    %v966 = vunpack.c.l.b16 %v232
    %v967 = vunpack.c.h.b16 %v232
    %v968 = vunpack.c.l.b16 %v233
    %v969 = vunpack.c.h.b16 %v233
    %v970 = vunpack.c.l.b16 %v234
    %v971 = vunpack.c.h.b16 %v234
    %v972 = vunpack.c.l.b16 %v235
    %v973 = vunpack.c.h.b16 %v235
    %v974 = vunpack.c.l.b16 %v236
    %v975 = vunpack.c.h.b16 %v236
    %v976 = vunpack.c.l.b16 %v237
    %v977 = vunpack.c.h.b16 %v237
    %v978 = vunpack.c.l.b16 %v238
    %v979 = vunpack.c.h.b16 %v238
    %v980 = vunpack.c.l.b16 %v239
    %v981 = vunpack.c.h.b16 %v239
    %v982 = vunpack.c.l.b16 %v240
    %v983 = vunpack.c.h.b16 %v240
    %v984 = vunpack.c.l.b16 %v241
    %v985 = vunpack.c.h.b16 %v241
    %v986 = vunpack.c.l.b16 %v242
    %v987 = vunpack.c.h.b16 %v242
    %v988 = vunpack.c.l.b16 %v243
    %v989 = vunpack.c.h.b16 %v243
    %v990 = vunpack.c.l.b16 %v244
    %v991 = vunpack.c.h.b16 %v244
    %v992 = vunpack.c.l.b16 %v245
    %v993 = vunpack.c.h.b16 %v245
    %v994 = vunpack.c.l.b16 %v246
    %v995 = vunpack.c.h.b16 %v246
    %v996 = vunpack.c.l.b16 %v247
    %v997 = vunpack.c.h.b16 %v247
    %v998 = vunpack.c.l.b16 %v248
    %v999 = vunpack.c.h.b16 %v248
    %v1000 = vunpack.c.l.b16 %v249
    %v1001 = vunpack.c.h.b16 %v249
    %v1002 = vunpack.c.l.b16 %v250
    %v1003 = vunpack.c.h.b16 %v250
    %v1004 = vunpack.c.l.b16 %v251
    %v1005 = vunpack.c.h.b16 %v251
    %v1006 = vunpack.c.l.b16 %v252
    %v1007 = vunpack.c.h.b16 %v252
    %v1008 = vunpack.c.l.b16 %v253
    %v1009 = vunpack.c.h.b16 %v253
    %v1010 = vunpack.c.l.b16 %v254
    %v1011 = vunpack.c.h.b16 %v254
    %v1012 = vunpack.c.l.b16 %v255
    %v1013 = vunpack.c.h.b16 %v255
    %v1014 = vunpack.c.l.b16 %v256
    %v1015 = vunpack.c.h.b16 %v256
    %v1016 = vunpack.c.l.b16 %v257
    %v1017 = vunpack.c.h.b16 %v257
    %v1018 = vunpack.c.l.b16 %v258
    %v1019 = vunpack.c.h.b16 %v258
    %v1020 = vunpack.c.l.b16 %v259
    %v1021 = vunpack.c.h.b16 %v259
    %v1022 = vunpack.c.l.b16 %v260
    %v1023 = vunpack.c.h.b16 %v260
    %v1024 = vunpack.c.l.b16 %v261
    %v1025 = vunpack.c.h.b16 %v261
    %v1026 = vunpack.c.l.b16 %v262
    %v1027 = vunpack.c.h.b16 %v262
    %v1028 = vunpack.c.l.b16 %v263
    %v1029 = vunpack.c.h.b16 %v263
    %v1030 = vunpack.c.l.b16 %v264
    %v1031 = vunpack.c.h.b16 %v264
    %v1032 = vunpack.c.l.b16 %v265
    %v1033 = vunpack.c.h.b16 %v265
    %v1034 = vpack.c.b16 %v602, %v578
    %v1035 = vpack.c.b16 %v603, %v579
    %v1036 = vpack.c.b16 %v604, %v580
    %v1037 = vpack.c.b16 %v605, %v581
    %v1038 = vpack.c.b16 %v606, %v582
    %v1039 = vpack.c.b16 %v607, %v583
    %v1040 = vpack.c.b16 %v608, %v584
    %v1041 = vpack.c.b16 %v609, %v585
    %v1042 = vpack.c.b16 %v610, %v586
    %v1043 = vpack.c.b16 %v611, %v587
    %v1044 = vpack.c.b16 %v612, %v588
    %v1045 = vpack.c.b16 %v613, %v589
    %v1046 = vpack.c.b16 %v614, %v590
    %v1047 = vpack.c.b16 %v615, %v591
    %v1048 = vpack.c.b16 %v616, %v592
    %v1049 = vpack.c.b16 %v617, %v593
    %v1050 = vpack.c.b16 %v618, %v594
    %v1051 = vpack.c.b16 %v619, %v595
    %v1052 = vpack.c.b16 %v620, %v596
    %v1053 = vpack.c.b16 %v621, %v597
    %v1054 = vpack.c.b16 %v622, %v598
    %v1055 = vpack.c.b16 %v623, %v599
    %v1056 = vpack.c.b16 %v624, %v600
    %v1057 = vpack.c.b16 %v625, %v601
    %v1058 = vpack.c.b16 %v650, %v626
    %v1059 = vpack.c.b16 %v651, %v627
    %v1060 = vpack.c.b16 %v652, %v628
    %v1061 = vpack.c.b16 %v653, %v629
    %v1062 = vpack.c.b16 %v654, %v630
    %v1063 = vpack.c.b16 %v655, %v631
    %v1064 = vpack.c.b16 %v656, %v632
    %v1065 = vpack.c.b16 %v657, %v633
    %v1066 = vpack.c.b16 %v658, %v634
    %v1067 = vpack.c.b16 %v659, %v635
    %v1068 = vpack.c.b16 %v660, %v636
    %v1069 = vpack.c.b16 %v661, %v637
    %v1070 = vpack.c.b16 %v662, %v638
    %v1071 = vpack.c.b16 %v663, %v639
    %v1072 = vpack.c.b16 %v664, %v640
    %v1073 = vpack.c.b16 %v665, %v641
    %v1074 = vpack.c.b16 %v666, %v642
    %v1075 = vpack.c.b16 %v667, %v643
    %v1076 = vpack.c.b16 %v668, %v644
    %v1077 = vpack.c.b16 %v669, %v645
    %v1078 = vpack.c.b16 %v670, %v646
    %v1079 = vpack.c.b16 %v671, %v647
    %v1080 = vpack.c.b16 %v672, %v648
    %v1081 = vpack.c.b16 %v673, %v649
    %v1082 = vpack.c.b16 %v698, %v674
    %v1083 = vpack.c.b16 %v699, %v675
    %v1084 = vpack.c.b16 %v700, %v676
    %v1085 = vpack.c.b16 %v701, %v677
    %v1086 = vpack.c.b16 %v702, %v678
    %v1087 = vpack.c.b16 %v703, %v679
    %v1088 = vpack.c.b16 %v704, %v680
    %v1089 = vpack.c.b16 %v705, %v681
    %v1090 = vpack.c.b16 %v706, %v682
    %v1091 = vpack.c.b16 %v707, %v683
    %v1092 = vpack.c.b16 %v708, %v684
    %v1093 = vpack.c.b16 %v709, %v685
    %v1094 = vpack.c.b16 %v710, %v686
    %v1095 = vpack.c.b16 %v711, %v687
    %v1096 = vpack.c.b16 %v712, %v688
    %v1097 = vpack.c.b16 %v713, %v689
    %v1098 = vpack.c.b16 %v714, %v690
    %v1099 = vpack.c.b16 %v715, %v691
    %v1100 = vpack.c.b16 %v716, %v692
    %v1101 = vpack.c.b16 %v717, %v693
    %v1102 = vpack.c.b16 %v718, %v694
    %v1103 = vpack.c.b16 %v719, %v695
    %v1104 = vpack.c.b16 %v720, %v696
    %v1105 = vpack.c.b16 %v721, %v697
    %v1106 = vpack.c.b16 %v746, %v722
    %v1107 = vpack.c.b16 %v747, %v723
    %v1108 = vpack.c.b16 %v748, %v724
    %v1109 = vpack.c.b16 %v749, %v725
    %v1110 = vpack.c.b16 %v750, %v726
    %v1111 = vpack.c.b16 %v751, %v727
    %v1112 = vpack.c.b16 %v752, %v728
    %v1113 = vpack.c.b16 %v753, %v729
    %v1114 = vpack.c.b16 %v754, %v730
    %v1115 = vpack.c.b16 %v755, %v731
    %v1116 = vpack.c.b16 %v756, %v732
    %v1117 = vpack.c.b16 %v757, %v733
    %v1118 = vpack.c.b16 %v758, %v734
    %v1119 = vpack.c.b16 %v759, %v735
    %v1120 = vpack.c.b16 %v760, %v736
    %v1121 = vpack.c.b16 %v761, %v737
    %v1122 = vpack.c.b16 %v762, %v738
    %v1123 = vpack.c.b16 %v763, %v739
    %v1124 = vpack.c.b16 %v764, %v740
    %v1125 = vpack.c.b16 %v765, %v741
    %v1126 = vpack.c.b16 %v766, %v742
    %v1127 = vpack.c.b16 %v767, %v743
    %v1128 = vpack.c.b16 %v768, %v744
    %v1129 = vpack.c.b16 %v769, %v745
    %v1130 = vpack.c.b16 %v794, %v770
    %v1131 = vpack.c.b16 %v795, %v771
    %v1132 = vpack.c.b16 %v796, %v772
    %v1133 = vpack.c.b16 %v797, %v773
    %v1134 = vpack.c.b16 %v798, %v774
    %v1135 = vpack.c.b16 %v799, %v775
    %v1136 = vpack.c.b16 %v800, %v776
    %v1137 = vpack.c.b16 %v801, %v777
    %v1138 = vpack.c.b16 %v802, %v778
    %v1139 = vpack.c.b16 %v803, %v779
    %v1140 = vpack.c.b16 %v804, %v780
    %v1141 = vpack.c.b16 %v805, %v781
    %v1142 = vpack.c.b16 %v806, %v782
    %v1143 = vpack.c.b16 %v807, %v783
    %v1144 = vpack.c.b16 %v808, %v784
    %v1145 = vpack.c.b16 %v809, %v785
    %v1146 = vpack.c.b16 %v810, %v786
    %v1147 = vpack.c.b16 %v811, %v787
    %v1148 = vpack.c.b16 %v812, %v788
    %v1149 = vpack.c.b16 %v813, %v789
    %v1150 = vpack.c.b16 %v814, %v790
    %v1151 = vpack.c.b16 %v815, %v791
    %v1152 = vpack.c.b16 %v816, %v792
    %v1153 = vpack.c.b16 %v817, %v793
    %v1154 = vpack.c.b16 %v842, %v818
    %v1155 = vpack.c.b16 %v843, %v819
    %v1156 = vpack.c.b16 %v844, %v820
    %v1157 = vpack.c.b16 %v845, %v821
    %v1158 = vpack.c.b16 %v846, %v822
    %v1159 = vpack.c.b16 %v847, %v823
    %v1160 = vpack.c.b16 %v848, %v824
    %v1161 = vpack.c.b16 %v849, %v825
    %v1162 = vpack.c.b16 %v850, %v826
    %v1163 = vpack.c.b16 %v851, %v827
    %v1164 = vpack.c.b16 %v852, %v828
    %v1165 = vpack.c.b16 %v853, %v829
    %v1166 = vpack.c.b16 %v854, %v830
    %v1167 = vpack.c.b16 %v855, %v831
    %v1168 = vpack.c.b16 %v856, %v832
    %v1169 = vpack.c.b16 %v857, %v833
    %v1170 = vpack.c.b16 %v858, %v834
    %v1171 = vpack.c.b16 %v859, %v835
    %v1172 = vpack.c.b16 %v860, %v836
    %v1173 = vpack.c.b16 %v861, %v837
    %v1174 = vpack.c.b16 %v862, %v838
    %v1175 = vpack.c.b16 %v863, %v839
    %v1176 = vpack.c.b16 %v864, %v840
    %v1177 = vpack.c.b16 %v865, %v841
    %v1178 = vpack.c.b16 %v890, %v866
    %v1179 = vpack.c.b16 %v891, %v867
    %v1180 = vpack.c.b16 %v892, %v868
    %v1181 = vpack.c.b16 %v893, %v869
    %v1182 = vpack.c.b16 %v894, %v870
    %v1183 = vpack.c.b16 %v895, %v871
    %v1184 = vpack.c.b16 %v896, %v872
    %v1185 = vpack.c.b16 %v897, %v873
    %v1186 = vpack.c.b16 %v898, %v874
    %v1187 = vpack.c.b16 %v899, %v875
    %v1188 = vpack.c.b16 %v900, %v876
    %v1189 = vpack.c.b16 %v901, %v877
    %v1190 = vpack.c.b16 %v902, %v878
    %v1191 = vpack.c.b16 %v903, %v879
    %v1192 = vpack.c.b16 %v904, %v880
    %v1193 = vpack.c.b16 %v905, %v881
    %v1194 = vpack.c.b16 %v906, %v882
    %v1195 = vpack.c.b16 %v907, %v883
    %v1196 = vpack.c.b16 %v908, %v884
    %v1197 = vpack.c.b16 %v909, %v885
    %v1198 = vpack.c.b16 %v910, %v886
    %v1199 = vpack.c.b16 %v911, %v887
    %v1200 = vpack.c.b16 %v912, %v888
    %v1201 = vpack.c.b16 %v913, %v889
    %v1202 = vpack.c.b16 %v938, %v914
    %v1203 = vpack.c.b16 %v939, %v915
    %v1204 = vpack.c.b16 %v940, %v916
    %v1205 = vpack.c.b16 %v941, %v917
    %v1206 = vpack.c.b16 %v942, %v918
    %v1207 = vpack.c.b16 %v943, %v919
    %v1208 = vpack.c.b16 %v944, %v920
    %v1209 = vpack.c.b16 %v945, %v921
    %v1210 = vpack.c.b16 %v946, %v922
    %v1211 = vpack.c.b16 %v947, %v923
    %v1212 = vpack.c.b16 %v948, %v924
    %v1213 = vpack.c.b16 %v949, %v925
    %v1214 = vpack.c.b16 %v950, %v926
    %v1215 = vpack.c.b16 %v951, %v927
    %v1216 = vpack.c.b16 %v952, %v928
    %v1217 = vpack.c.b16 %v953, %v929
    %v1218 = vpack.c.b16 %v954, %v930
    %v1219 = vpack.c.b16 %v955, %v931
    %v1220 = vpack.c.b16 %v956, %v932
    %v1221 = vpack.c.b16 %v957, %v933
    %v1222 = vpack.c.b16 %v958, %v934
    %v1223 = vpack.c.b16 %v959, %v935
    %v1224 = vpack.c.b16 %v960, %v936
    %v1225 = vpack.c.b16 %v961, %v937
    %v1226 = vpack.c.b16 %v986, %v962
    %v1227 = vpack.c.b16 %v987, %v963
    %v1228 = vpack.c.b16 %v988, %v964
    %v1229 = vpack.c.b16 %v989, %v965
    %v1230 = vpack.c.b16 %v990, %v966
    %v1231 = vpack.c.b16 %v991, %v967
    %v1232 = vpack.c.b16 %v992, %v968
    %v1233 = vpack.c.b16 %v993, %v969
    %v1234 = vpack.c.b16 %v994, %v970
    %v1235 = vpack.c.b16 %v995, %v971
    %v1236 = vpack.c.b16 %v996, %v972
    %v1237 = vpack.c.b16 %v997, %v973
    %v1238 = vpack.c.b16 %v998, %v974
    %v1239 = vpack.c.b16 %v999, %v975
    %v1240 = vpack.c.b16 %v1000, %v976
    %v1241 = vpack.c.b16 %v1001, %v977
    %v1242 = vpack.c.b16 %v1002, %v978
    %v1243 = vpack.c.b16 %v1003, %v979
    %v1244 = vpack.c.b16 %v1004, %v980
    %v1245 = vpack.c.b16 %v1005, %v981
    %v1246 = vpack.c.b16 %v1006, %v982
    %v1247 = vpack.c.b16 %v1007, %v983
    %v1248 = vpack.c.b16 %v1008, %v984
    %v1249 = vpack.c.b16 %v1009, %v985
    %v1250 = vpack.c.b16 %v1010, %v1010
    %v1251 = vpack.c.b16 %v1011, %v1011
    %v1252 = vpack.c.b16 %v1012, %v1012
    %v1253 = vpack.c.b16 %v1013, %v1013
    %v1254 = vpack.c.b16 %v1014, %v1014
    %v1255 = vpack.c.b16 %v1015, %v1015
    %v1256 = vpack.c.b16 %v1016, %v1016
    %v1257 = vpack.c.b16 %v1017, %v1017
    %v1258 = vpack.c.b16 %v1018, %v1018
    %v1259 = vpack.c.b16 %v1019, %v1019
    %v1260 = vpack.c.b16 %v1020, %v1020
    %v1261 = vpack.c.b16 %v1021, %v1021
    %v1262 = vpack.c.b16 %v1022, %v1022
    %v1263 = vpack.c.b16 %v1023, %v1023
    %v1264 = vpack.c.b16 %v1024, %v1024
    %v1265 = vpack.c.b16 %v1025, %v1025
    %v1266 = vpack.c.b16 %v1026, %v1026
    %v1267 = vpack.c.b16 %v1027, %v1027
    %v1268 = vpack.c.b16 %v1028, %v1028
    %v1269 = vpack.c.b16 %v1029, %v1029
    %v1270 = vpack.c.b16 %v1030, %v1030
    %v1271 = vpack.c.b16 %v1031, %v1031
    %v1272 = vpack.c.b16 %v1032, %v1032
    %v1273 = vpack.c.b16 %v1033, %v1033
    %vm1490 = vcmask 154624
    %v1492 = vsel %vm1490, %v339, 0
    %v1495 = vsel %vm1490, %v341, 0
    %v1498 = vsel %vm1490, %v343, 0
    %v1501 = vsel %vm1490, %v345, 0
    %vm1503 = vcmask 1040384
    %vm1504 = vcmask 1041408
    %v1505 = vsel %vm1503, 4294967295, 65535
    %v1506 = vsel %vm1504, %v1505, 0
    %v1508 = vand.u32 %v1250, %v1506
    %v1511 = vand.u32 %v1251, %v1506
    %v1514 = vand.u32 %v1252, %v1506
    %v1517 = vand.u32 %v1253, %v1506
    %v1520 = vand.u32 %v1254, %v1506
    %v1523 = vand.u32 %v1255, %v1506
    %v1526 = vand.u32 %v1256, %v1506
    %v1529 = vand.u32 %v1257, %v1506
    %v1532 = vand.u32 %v1258, %v1506
    %v1535 = vand.u32 %v1259, %v1506
    %v1538 = vand.u32 %v1260, %v1506
    %v1541 = vand.u32 %v1261, %v1506
    %v1544 = vand.u32 %v1262, %v1506
    %v1547 = vand.u32 %v1263, %v1506
    %v1550 = vand.u32 %v1264, %v1506
    %v1553 = vand.u32 %v1265, %v1506
    %v1556 = vand.u32 %v1266, %v1506
    %v1559 = vand.u32 %v1267, %v1506
    %v1562 = vand.u32 %v1268, %v1506
    %v1565 = vand.u32 %v1269, %v1506
    %v1568 = vand.u32 %v1270, %v1506
    %v1571 = vand.u32 %v1271, %v1506
    %v1574 = vand.u32 %v1272, %v1506
    %v1577 = vand.u32 %v1273, %v1506
    %1579 = vmatprep.subr.bf16.mxu0 %v1035
    %1580 = vmatpush1.bf16.msra.mxu0 %v1034
    %1581 = vmatprep.subr.bf16.mxu0 %v1059
    %1582 = vmatpush1.bf16.msra.mxu0 %v1058
    %1583 = vmatprep.subr.bf16.mxu0 %v1083
    %1584 = vmatpush1.bf16.msra.mxu0 %v1082
    %1585 = vmatprep.subr.bf16.mxu0 %v1107
    %1586 = vmatpush1.bf16.msra.mxu0 %v1106
    %1587 = vmatprep.subr.bf16.mxu0 %v1131
    %1588 = vmatpush1.bf16.msra.mxu0 %v1130
    %1589 = vmatprep.subr.bf16.mxu0 %v1155
    %1590 = vmatpush1.bf16.msra.mxu0 %v1154
    %1591 = vmatprep.subr.bf16.mxu0 %v1179
    %1592 = vmatpush1.bf16.msra.mxu0 %v1178
    %1593 = vmatprep.subr.bf16.mxu0 %v1203
    %1594 = vmatpush1.bf16.msra.mxu0 %v1202
    %1595 = vmatprep.subr.bf16.mxu0 %v1227
    %1596 = vmatpush1.bf16.msra.mxu0 %v1226
    %1597 = vmatprep.subr.bf16.mxu0 %v1511
    %1598 = vmatpush1.bf16.msra.mxu0 %v1508
    %1599 = vmatprep.subr.bf16.mxu0 0
    %1600 = vmatpush1.bf16.msra.mxu0 0
    %1601 = vmatprep.subr.bf16.mxu0 0
    %1602 = vmatpush1.bf16.msra.mxu0 0
    %1603 = vmatprep.subr.bf16.mxu0 0
    %1604 = vmatpush1.bf16.msra.mxu0 0
    %1605 = vmatprep.subr.bf16.mxu0 0
    %1606 = vmatpush1.bf16.msra.mxu0 0
    %1607 = vmatprep.subr.bf16.mxu0 0
    %1608 = vmatpush1.bf16.msra.mxu0 0
    %1609 = vmatprep.subr.bf16.mxu0 0
    %1610 = vmatpush1.bf16.msra.mxu0 0
    %1611 = vmatprep.mubr.bf16.mxu0 %v1492
    %1612 = vmatmul.mubr.bf16.gmra.mrb[0].mxu0 %v338
    %v1613 = vpop.f32.mrb[0].mxu0
    %v1614 = vadd.f32 %v277, %v1613
    %v1615 = vpop.f32.mrb[0].mxu0
    %v1616 = vadd.f32 %v277, %v1615
    %v1617 = vpop.f32.mrb[0].mxu0
    %v1618 = vadd.f32 %v282, %v1617
    %v1619 = vpop.f32.mrb[0].mxu0
    %v1620 = vadd.f32 %v282, %v1619
    %1621 = vmatprep.mubr.bf16.mxu0 %v1495
    %1622 = vmatmul.mubr.bf16.gmra.mrb[0].mxu0 %v340
    %v1623 = vpop.f32.mrb[0].mxu0
    %v1624 = vadd.f32 %v287, %v1623
    %v1625 = vpop.f32.mrb[0].mxu0
    %v1626 = vadd.f32 %v287, %v1625
    %v1627 = vpop.f32.mrb[0].mxu0
    %v1628 = vadd.f32 %v292, %v1627
    %v1629 = vpop.f32.mrb[0].mxu0
    %v1630 = vadd.f32 %v292, %v1629
    %1631 = vmatprep.mubr.bf16.mxu0 %v1498
    %1632 = vmatmul.mubr.bf16.gmra.mrb[0].mxu0 %v342
    %v1633 = vpop.f32.mrb[0].mxu0
    %v1634 = vadd.f32 %v297, %v1633
    %v1635 = vpop.f32.mrb[0].mxu0
    %v1636 = vadd.f32 %v297, %v1635
    %v1637 = vpop.f32.mrb[0].mxu0
    %v1638 = vadd.f32 %v302, %v1637
    %v1639 = vpop.f32.mrb[0].mxu0
    %v1640 = vadd.f32 %v302, %v1639
    %1641 = vmatprep.mubr.bf16.mxu0 %v1501
    %1642 = vmatmul.mubr.bf16.gmra.mrb[0].mxu0 %v344
    %v1643 = vpop.f32.mrb[0].mxu0
    %v1644 = vadd.f32 %v307, %v1643
    %v1645 = vpop.f32.mrb[0].mxu0
    %v1646 = vadd.f32 %v307, %v1645
    %v1647 = vpop.f32.mrb[0].mxu0
    %v1648 = vadd.f32 %v312, %v1647
    %v1649 = vpop.f32.mrb[0].mxu0
    %v1650 = vadd.f32 %v312, %v1649
    %1651 = vdwg.mxu0
    %1652 = vmatprep.subr.bf16.mxu0 %v1037
    %1653 = vmatpush1.bf16.msra.mxu0 %v1036
    %1654 = vmatprep.subr.bf16.mxu0 %v1061
    %1655 = vmatpush1.bf16.msra.mxu0 %v1060
    %1656 = vmatprep.subr.bf16.mxu0 %v1085
    %1657 = vmatpush1.bf16.msra.mxu0 %v1084
    %1658 = vmatprep.subr.bf16.mxu0 %v1109
    %1659 = vmatpush1.bf16.msra.mxu0 %v1108
    %1660 = vmatprep.subr.bf16.mxu0 %v1133
    %1661 = vmatpush1.bf16.msra.mxu0 %v1132
    %1662 = vmatprep.subr.bf16.mxu0 %v1157
    %1663 = vmatpush1.bf16.msra.mxu0 %v1156
    %1664 = vmatprep.subr.bf16.mxu0 %v1181
    %1665 = vmatpush1.bf16.msra.mxu0 %v1180
    %1666 = vmatprep.subr.bf16.mxu0 %v1205
    %1667 = vmatpush1.bf16.msra.mxu0 %v1204
    %1668 = vmatprep.subr.bf16.mxu0 %v1229
    %1669 = vmatpush1.bf16.msra.mxu0 %v1228
    %1670 = vmatprep.subr.bf16.mxu0 %v1517
    %1671 = vmatpush1.bf16.msra.mxu0 %v1514
    %1672 = vmatprep.subr.bf16.mxu0 0
    %1673 = vmatpush1.bf16.msra.mxu0 0
    %1674 = vmatprep.subr.bf16.mxu0 0
    %1675 = vmatpush1.bf16.msra.mxu0 0
    %1676 = vmatprep.subr.bf16.mxu0 0
    %1677 = vmatpush1.bf16.msra.mxu0 0
    %1678 = vmatprep.subr.bf16.mxu0 0
    %1679 = vmatpush1.bf16.msra.mxu0 0
    %1680 = vmatprep.subr.bf16.mxu0 0
    %1681 = vmatpush1.bf16.msra.mxu0 0
    %1682 = vmatprep.subr.bf16.mxu0 0
    %1683 = vmatpush1.bf16.msra.mxu0 0
    %1684 = vmatprep.mubr.bf16.mxu0 %v1492
    %1685 = vmatmul.mubr.bf16.gmra.mrb[0].mxu0 %v338
    %v1686 = vpop.f32.mrb[0].mxu0
    %v1687 = vadd.f32 %v277, %v1686
    %v1688 = vpop.f32.mrb[0].mxu0
    %v1689 = vadd.f32 %v277, %v1688
    %v1690 = vpop.f32.mrb[0].mxu0
    %v1691 = vadd.f32 %v282, %v1690
    %v1692 = vpop.f32.mrb[0].mxu0
    %v1693 = vadd.f32 %v282, %v1692
    %1694 = vmatprep.mubr.bf16.mxu0 %v1495
    %1695 = vmatmul.mubr.bf16.gmra.mrb[0].mxu0 %v340
    %v1696 = vpop.f32.mrb[0].mxu0
    %v1697 = vadd.f32 %v287, %v1696
    %v1698 = vpop.f32.mrb[0].mxu0
    %v1699 = vadd.f32 %v287, %v1698
    %v1700 = vpop.f32.mrb[0].mxu0
    %v1701 = vadd.f32 %v292, %v1700
    %v1702 = vpop.f32.mrb[0].mxu0
    %v1703 = vadd.f32 %v292, %v1702
    %1704 = vmatprep.mubr.bf16.mxu0 %v1498
    %1705 = vmatmul.mubr.bf16.gmra.mrb[0].mxu0 %v342
    %v1706 = vpop.f32.mrb[0].mxu0
    %v1707 = vadd.f32 %v297, %v1706
    %v1708 = vpop.f32.mrb[0].mxu0
    %v1709 = vadd.f32 %v297, %v1708
    %v1710 = vpop.f32.mrb[0].mxu0
    %v1711 = vadd.f32 %v302, %v1710
    %v1712 = vpop.f32.mrb[0].mxu0
    %v1713 = vadd.f32 %v302, %v1712
    %1714 = vmatprep.mubr.bf16.mxu0 %v1501
    %1715 = vmatmul.mubr.bf16.gmra.mrb[0].mxu0 %v344
    %v1716 = vpop.f32.mrb[0].mxu0
    %v1717 = vadd.f32 %v307, %v1716
    %v1718 = vpop.f32.mrb[0].mxu0
    %v1719 = vadd.f32 %v307, %v1718
    %v1720 = vpop.f32.mrb[0].mxu0
    %v1721 = vadd.f32 %v312, %v1720
    %v1722 = vpop.f32.mrb[0].mxu0
    %v1723 = vadd.f32 %v312, %v1722
    %1724 = vdwg.mxu0
    %1725 = vmatprep.subr.bf16.mxu0 %v1039
    %1726 = vmatpush1.bf16.msra.mxu0 %v1038
    %1727 = vmatprep.subr.bf16.mxu0 %v1063
    %1728 = vmatpush1.bf16.msra.mxu0 %v1062
    %1729 = vmatprep.subr.bf16.mxu0 %v1087
    %1730 = vmatpush1.bf16.msra.mxu0 %v1086
    %1731 = vmatprep.subr.bf16.mxu0 %v1111
    %1732 = vmatpush1.bf16.msra.mxu0 %v1110
    %1733 = vmatprep.subr.bf16.mxu0 %v1135
    %1734 = vmatpush1.bf16.msra.mxu0 %v1134
    %1735 = vmatprep.subr.bf16.mxu0 %v1159
    %1736 = vmatpush1.bf16.msra.mxu0 %v1158
    %1737 = vmatprep.subr.bf16.mxu0 %v1183
    %1738 = vmatpush1.bf16.msra.mxu0 %v1182
    %1739 = vmatprep.subr.bf16.mxu0 %v1207
    %1740 = vmatpush1.bf16.msra.mxu0 %v1206
    %1741 = vmatprep.subr.bf16.mxu0 %v1231
    %1742 = vmatpush1.bf16.msra.mxu0 %v1230
    %1743 = vmatprep.subr.bf16.mxu0 %v1523
    %1744 = vmatpush1.bf16.msra.mxu0 %v1520
    %1745 = vmatprep.subr.bf16.mxu0 0
    %1746 = vmatpush1.bf16.msra.mxu0 0
    %1747 = vmatprep.subr.bf16.mxu0 0
    %1748 = vmatpush1.bf16.msra.mxu0 0
    %1749 = vmatprep.subr.bf16.mxu0 0
    %1750 = vmatpush1.bf16.msra.mxu0 0
    %1751 = vmatprep.subr.bf16.mxu0 0
    %1752 = vmatpush1.bf16.msra.mxu0 0
    %1753 = vmatprep.subr.bf16.mxu0 0
    %1754 = vmatpush1.bf16.msra.mxu0 0
    %1755 = vmatprep.subr.bf16.mxu0 0
    %1756 = vmatpush1.bf16.msra.mxu0 0
    %1757 = vmatprep.mubr.bf16.mxu0 %v1492
    %1758 = vmatmul.mubr.bf16.gmra.mrb[0].mxu0 %v338
    %v1759 = vpop.f32.mrb[0].mxu0
    %v1760 = vadd.f32 %v277, %v1759
    %v1761 = vpop.f32.mrb[0].mxu0
    %v1762 = vadd.f32 %v277, %v1761
    %v1763 = vpop.f32.mrb[0].mxu0
    %v1764 = vadd.f32 %v282, %v1763
    %v1765 = vpop.f32.mrb[0].mxu0
    %v1766 = vadd.f32 %v282, %v1765
    %1767 = vmatprep.mubr.bf16.mxu0 %v1495
    %1768 = vmatmul.mubr.bf16.gmra.mrb[0].mxu0 %v340
    %v1769 = vpop.f32.mrb[0].mxu0
    %v1770 = vadd.f32 %v287, %v1769
    %v1771 = vpop.f32.mrb[0].mxu0
    %v1772 = vadd.f32 %v287, %v1771
    %v1773 = vpop.f32.mrb[0].mxu0
    %v1774 = vadd.f32 %v292, %v1773
    %v1775 = vpop.f32.mrb[0].mxu0
    %v1776 = vadd.f32 %v292, %v1775
    %1777 = vmatprep.mubr.bf16.mxu0 %v1498
    %1778 = vmatmul.mubr.bf16.gmra.mrb[0].mxu0 %v342
    %v1779 = vpop.f32.mrb[0].mxu0
    %v1780 = vadd.f32 %v297, %v1779
    %v1781 = vpop.f32.mrb[0].mxu0
    %v1782 = vadd.f32 %v297, %v1781
    %v1783 = vpop.f32.mrb[0].mxu0
    %v1784 = vadd.f32 %v302, %v1783
    %v1785 = vpop.f32.mrb[0].mxu0
    %v1786 = vadd.f32 %v302, %v1785
    %1787 = vmatprep.mubr.bf16.mxu0 %v1501
    %1788 = vmatmul.mubr.bf16.gmra.mrb[0].mxu0 %v344
    %v1789 = vpop.f32.mrb[0].mxu0
    %v1790 = vadd.f32 %v307, %v1789
    %v1791 = vpop.f32.mrb[0].mxu0
    %v1792 = vadd.f32 %v307, %v1791
    %v1793 = vpop.f32.mrb[0].mxu0
    %v1794 = vadd.f32 %v312, %v1793
    %v1795 = vpop.f32.mrb[0].mxu0
    %v1796 = vadd.f32 %v312, %v1795
    %1797 = vdwg.mxu0
    %1798 = vmatprep.subr.bf16.mxu0 %v1041
    %1799 = vmatpush1.bf16.msra.mxu0 %v1040
    %1800 = vmatprep.subr.bf16.mxu0 %v1065
    %1801 = vmatpush1.bf16.msra.mxu0 %v1064
    %1802 = vmatprep.subr.bf16.mxu0 %v1089
    %1803 = vmatpush1.bf16.msra.mxu0 %v1088
    %1804 = vmatprep.subr.bf16.mxu0 %v1113
    %1805 = vmatpush1.bf16.msra.mxu0 %v1112
    %1806 = vmatprep.subr.bf16.mxu0 %v1137
    %1807 = vmatpush1.bf16.msra.mxu0 %v1136
    %1808 = vmatprep.subr.bf16.mxu0 %v1161
    %1809 = vmatpush1.bf16.msra.mxu0 %v1160
    %1810 = vmatprep.subr.bf16.mxu0 %v1185
    %1811 = vmatpush1.bf16.msra.mxu0 %v1184
    %1812 = vmatprep.subr.bf16.mxu0 %v1209
    %1813 = vmatpush1.bf16.msra.mxu0 %v1208
    %1814 = vmatprep.subr.bf16.mxu0 %v1233
    %1815 = vmatpush1.bf16.msra.mxu0 %v1232
    %1816 = vmatprep.subr.bf16.mxu0 %v1529
    %1817 = vmatpush1.bf16.msra.mxu0 %v1526
    %1818 = vmatprep.subr.bf16.mxu0 0
    %1819 = vmatpush1.bf16.msra.mxu0 0
    %1820 = vmatprep.subr.bf16.mxu0 0
    %1821 = vmatpush1.bf16.msra.mxu0 0
    %1822 = vmatprep.subr.bf16.mxu0 0
    %1823 = vmatpush1.bf16.msra.mxu0 0
    %1824 = vmatprep.subr.bf16.mxu0 0
    %1825 = vmatpush1.bf16.msra.mxu0 0
    %1826 = vmatprep.subr.bf16.mxu0 0
    %1827 = vmatpush1.bf16.msra.mxu0 0
    %1828 = vmatprep.subr.bf16.mxu0 0
    %1829 = vmatpush1.bf16.msra.mxu0 0
    %1830 = vmatprep.mubr.bf16.mxu0 %v1492
    %1831 = vmatmul.mubr.bf16.gmra.mrb[0].mxu0 %v338
    %v1832 = vpop.f32.mrb[0].mxu0
    %v1833 = vadd.f32 %v277, %v1832
    %v1834 = vpop.f32.mrb[0].mxu0
    %v1835 = vadd.f32 %v277, %v1834
    %v1836 = vpop.f32.mrb[0].mxu0
    %v1837 = vadd.f32 %v282, %v1836
    %v1838 = vpop.f32.mrb[0].mxu0
    %v1839 = vadd.f32 %v282, %v1838
    %1840 = vmatprep.mubr.bf16.mxu0 %v1495
    %1841 = vmatmul.mubr.bf16.gmra.mrb[0].mxu0 %v340
    %v1842 = vpop.f32.mrb[0].mxu0
    %v1843 = vadd.f32 %v287, %v1842
    %v1844 = vpop.f32.mrb[0].mxu0
    %v1845 = vadd.f32 %v287, %v1844
    %v1846 = vpop.f32.mrb[0].mxu0
    %v1847 = vadd.f32 %v292, %v1846
    %v1848 = vpop.f32.mrb[0].mxu0
    %v1849 = vadd.f32 %v292, %v1848
    %1850 = vmatprep.mubr.bf16.mxu0 %v1498
    %1851 = vmatmul.mubr.bf16.gmra.mrb[0].mxu0 %v342
    %v1852 = vpop.f32.mrb[0].mxu0
    %v1853 = vadd.f32 %v297, %v1852
    %v1854 = vpop.f32.mrb[0].mxu0
    %v1855 = vadd.f32 %v297, %v1854
    %v1856 = vpop.f32.mrb[0].mxu0
    %v1857 = vadd.f32 %v302, %v1856
    %v1858 = vpop.f32.mrb[0].mxu0
    %v1859 = vadd.f32 %v302, %v1858
    %1860 = vmatprep.mubr.bf16.mxu0 %v1501
    %1861 = vmatmul.mubr.bf16.gmra.mrb[0].mxu0 %v344
    %v1862 = vpop.f32.mrb[0].mxu0
    %v1863 = vadd.f32 %v307, %v1862
    %v1864 = vpop.f32.mrb[0].mxu0
    %v1865 = vadd.f32 %v307, %v1864
    %v1866 = vpop.f32.mrb[0].mxu0
    %v1867 = vadd.f32 %v312, %v1866
    %v1868 = vpop.f32.mrb[0].mxu0
    %v1869 = vadd.f32 %v312, %v1868
    %1870 = vdwg.mxu0
    %1871 = vmatprep.subr.bf16.mxu0 %v1043
    %1872 = vmatpush1.bf16.msra.mxu0 %v1042
    %1873 = vmatprep.subr.bf16.mxu0 %v1067
    %1874 = vmatpush1.bf16.msra.mxu0 %v1066
    %1875 = vmatprep.subr.bf16.mxu0 %v1091
    %1876 = vmatpush1.bf16.msra.mxu0 %v1090
    %1877 = vmatprep.subr.bf16.mxu0 %v1115
    %1878 = vmatpush1.bf16.msra.mxu0 %v1114
    %1879 = vmatprep.subr.bf16.mxu0 %v1139
    %1880 = vmatpush1.bf16.msra.mxu0 %v1138
    %1881 = vmatprep.subr.bf16.mxu0 %v1163
    %1882 = vmatpush1.bf16.msra.mxu0 %v1162
    %1883 = vmatprep.subr.bf16.mxu0 %v1187
    %1884 = vmatpush1.bf16.msra.mxu0 %v1186
    %1885 = vmatprep.subr.bf16.mxu0 %v1211
    %1886 = vmatpush1.bf16.msra.mxu0 %v1210
    %1887 = vmatprep.subr.bf16.mxu0 %v1235
    %1888 = vmatpush1.bf16.msra.mxu0 %v1234
    %1889 = vmatprep.subr.bf16.mxu0 %v1535
    %1890 = vmatpush1.bf16.msra.mxu0 %v1532
    %1891 = vmatprep.subr.bf16.mxu0 0
    %1892 = vmatpush1.bf16.msra.mxu0 0
    %1893 = vmatprep.subr.bf16.mxu0 0
    %1894 = vmatpush1.bf16.msra.mxu0 0
    %1895 = vmatprep.subr.bf16.mxu0 0
    %1896 = vmatpush1.bf16.msra.mxu0 0
    %1897 = vmatprep.subr.bf16.mxu0 0
    %1898 = vmatpush1.bf16.msra.mxu0 0
    %1899 = vmatprep.subr.bf16.mxu0 0
    %1900 = vmatpush1.bf16.msra.mxu0 0
    %1901 = vmatprep.subr.bf16.mxu0 0
    %1902 = vmatpush1.bf16.msra.mxu0 0
    %1903 = vmatprep.mubr.bf16.mxu0 %v1492
    %1904 = vmatmul.mubr.bf16.gmra.mrb[0].mxu0 %v338
    %v1905 = vpop.f32.mrb[0].mxu0
    %v1906 = vadd.f32 %v277, %v1905
    %v1907 = vpop.f32.mrb[0].mxu0
    %v1908 = vadd.f32 %v277, %v1907
    %v1909 = vpop.f32.mrb[0].mxu0
    %v1910 = vadd.f32 %v282, %v1909
    %v1911 = vpop.f32.mrb[0].mxu0
    %v1912 = vadd.f32 %v282, %v1911
    %1913 = vmatprep.mubr.bf16.mxu0 %v1495
    %1914 = vmatmul.mubr.bf16.gmra.mrb[0].mxu0 %v340
    %v1915 = vpop.f32.mrb[0].mxu0
    %v1916 = vadd.f32 %v287, %v1915
    %v1917 = vpop.f32.mrb[0].mxu0
    %v1918 = vadd.f32 %v287, %v1917
    %v1919 = vpop.f32.mrb[0].mxu0
    %v1920 = vadd.f32 %v292, %v1919
    %v1921 = vpop.f32.mrb[0].mxu0
    %v1922 = vadd.f32 %v292, %v1921
    %1923 = vmatprep.mubr.bf16.mxu0 %v1498
    %1924 = vmatmul.mubr.bf16.gmra.mrb[0].mxu0 %v342
    %v1925 = vpop.f32.mrb[0].mxu0
    %v1926 = vadd.f32 %v297, %v1925
    %v1927 = vpop.f32.mrb[0].mxu0
    %v1928 = vadd.f32 %v297, %v1927
    %v1929 = vpop.f32.mrb[0].mxu0
    %v1930 = vadd.f32 %v302, %v1929
    %v1931 = vpop.f32.mrb[0].mxu0
    %v1932 = vadd.f32 %v302, %v1931
    %1933 = vmatprep.mubr.bf16.mxu0 %v1501
    %1934 = vmatmul.mubr.bf16.gmra.mrb[0].mxu0 %v344
    %v1935 = vpop.f32.mrb[0].mxu0
    %v1936 = vadd.f32 %v307, %v1935
    %v1937 = vpop.f32.mrb[0].mxu0
    %v1938 = vadd.f32 %v307, %v1937
    %v1939 = vpop.f32.mrb[0].mxu0
    %v1940 = vadd.f32 %v312, %v1939
    %v1941 = vpop.f32.mrb[0].mxu0
    %v1942 = vadd.f32 %v312, %v1941
    %1943 = vdwg.mxu0
    %1944 = vmatprep.subr.bf16.mxu0 %v1045
    %1945 = vmatpush1.bf16.msra.mxu0 %v1044
    %1946 = vmatprep.subr.bf16.mxu0 %v1069
    %1947 = vmatpush1.bf16.msra.mxu0 %v1068
    %1948 = vmatprep.subr.bf16.mxu0 %v1093
    %1949 = vmatpush1.bf16.msra.mxu0 %v1092
    %1950 = vmatprep.subr.bf16.mxu0 %v1117
    %1951 = vmatpush1.bf16.msra.mxu0 %v1116
    %1952 = vmatprep.subr.bf16.mxu0 %v1141
    %1953 = vmatpush1.bf16.msra.mxu0 %v1140
    %1954 = vmatprep.subr.bf16.mxu0 %v1165
    %1955 = vmatpush1.bf16.msra.mxu0 %v1164
    %1956 = vmatprep.subr.bf16.mxu0 %v1189
    %1957 = vmatpush1.bf16.msra.mxu0 %v1188
    %1958 = vmatprep.subr.bf16.mxu0 %v1213
    %1959 = vmatpush1.bf16.msra.mxu0 %v1212
    %1960 = vmatprep.subr.bf16.mxu0 %v1237
    %1961 = vmatpush1.bf16.msra.mxu0 %v1236
    %1962 = vmatprep.subr.bf16.mxu0 %v1541
    %1963 = vmatpush1.bf16.msra.mxu0 %v1538
    %1964 = vmatprep.subr.bf16.mxu0 0
    %1965 = vmatpush1.bf16.msra.mxu0 0
    %1966 = vmatprep.subr.bf16.mxu0 0
    %1967 = vmatpush1.bf16.msra.mxu0 0
    %1968 = vmatprep.subr.bf16.mxu0 0
    %1969 = vmatpush1.bf16.msra.mxu0 0
    %1970 = vmatprep.subr.bf16.mxu0 0
    %1971 = vmatpush1.bf16.msra.mxu0 0
    %1972 = vmatprep.subr.bf16.mxu0 0
    %1973 = vmatpush1.bf16.msra.mxu0 0
    %1974 = vmatprep.subr.bf16.mxu0 0
    %1975 = vmatpush1.bf16.msra.mxu0 0
    %1976 = vmatprep.mubr.bf16.mxu0 %v1492
    %1977 = vmatmul.mubr.bf16.gmra.mrb[0].mxu0 %v338
    %v1978 = vpop.f32.mrb[0].mxu0
    %v1979 = vadd.f32 %v277, %v1978
    %v1980 = vpop.f32.mrb[0].mxu0
    %v1981 = vadd.f32 %v277, %v1980
    %v1982 = vpop.f32.mrb[0].mxu0
    %v1983 = vadd.f32 %v282, %v1982
    %v1984 = vpop.f32.mrb[0].mxu0
    %v1985 = vadd.f32 %v282, %v1984
    %1986 = vmatprep.mubr.bf16.mxu0 %v1495
    %1987 = vmatmul.mubr.bf16.gmra.mrb[0].mxu0 %v340
    %v1988 = vpop.f32.mrb[0].mxu0
    %v1989 = vadd.f32 %v287, %v1988
    %v1990 = vpop.f32.mrb[0].mxu0
    %v1991 = vadd.f32 %v287, %v1990
    %v1992 = vpop.f32.mrb[0].mxu0
    %v1993 = vadd.f32 %v292, %v1992
    %v1994 = vpop.f32.mrb[0].mxu0
    %v1995 = vadd.f32 %v292, %v1994
    %1996 = vmatprep.mubr.bf16.mxu0 %v1498
    %1997 = vmatmul.mubr.bf16.gmra.mrb[0].mxu0 %v342
    %v1998 = vpop.f32.mrb[0].mxu0
    %v1999 = vadd.f32 %v297, %v1998
    %v2000 = vpop.f32.mrb[0].mxu0
    %v2001 = vadd.f32 %v297, %v2000
    %v2002 = vpop.f32.mrb[0].mxu0
    %v2003 = vadd.f32 %v302, %v2002
    %v2004 = vpop.f32.mrb[0].mxu0
    %v2005 = vadd.f32 %v302, %v2004
    %2006 = vmatprep.mubr.bf16.mxu0 %v1501
    %2007 = vmatmul.mubr.bf16.gmra.mrb[0].mxu0 %v344
    %v2008 = vpop.f32.mrb[0].mxu0
    %v2009 = vadd.f32 %v307, %v2008
    %v2010 = vpop.f32.mrb[0].mxu0
    %v2011 = vadd.f32 %v307, %v2010
    %v2012 = vpop.f32.mrb[0].mxu0
    %v2013 = vadd.f32 %v312, %v2012
    %v2014 = vpop.f32.mrb[0].mxu0
    %v2015 = vadd.f32 %v312, %v2014
    %2016 = vdwg.mxu0
    %2017 = vmatprep.subr.bf16.mxu0 %v1047
    %2018 = vmatpush1.bf16.msra.mxu0 %v1046
    %2019 = vmatprep.subr.bf16.mxu0 %v1071
    %2020 = vmatpush1.bf16.msra.mxu0 %v1070
    %2021 = vmatprep.subr.bf16.mxu0 %v1095
    %2022 = vmatpush1.bf16.msra.mxu0 %v1094
    %2023 = vmatprep.subr.bf16.mxu0 %v1119
    %2024 = vmatpush1.bf16.msra.mxu0 %v1118
    %2025 = vmatprep.subr.bf16.mxu0 %v1143
    %2026 = vmatpush1.bf16.msra.mxu0 %v1142
    %2027 = vmatprep.subr.bf16.mxu0 %v1167
    %2028 = vmatpush1.bf16.msra.mxu0 %v1166
    %2029 = vmatprep.subr.bf16.mxu0 %v1191
    %2030 = vmatpush1.bf16.msra.mxu0 %v1190
    %2031 = vmatprep.subr.bf16.mxu0 %v1215
    %2032 = vmatpush1.bf16.msra.mxu0 %v1214
    %2033 = vmatprep.subr.bf16.mxu0 %v1239
    %2034 = vmatpush1.bf16.msra.mxu0 %v1238
    %2035 = vmatprep.subr.bf16.mxu0 %v1547
    %2036 = vmatpush1.bf16.msra.mxu0 %v1544
    %2037 = vmatprep.subr.bf16.mxu0 0
    %2038 = vmatpush1.bf16.msra.mxu0 0
    %2039 = vmatprep.subr.bf16.mxu0 0
    %2040 = vmatpush1.bf16.msra.mxu0 0
    %2041 = vmatprep.subr.bf16.mxu0 0
    %2042 = vmatpush1.bf16.msra.mxu0 0
    %2043 = vmatprep.subr.bf16.mxu0 0
    %2044 = vmatpush1.bf16.msra.mxu0 0
    %2045 = vmatprep.subr.bf16.mxu0 0
    %2046 = vmatpush1.bf16.msra.mxu0 0
    %2047 = vmatprep.subr.bf16.mxu0 0
    %2048 = vmatpush1.bf16.msra.mxu0 0
    %2049 = vmatprep.mubr.bf16.mxu0 %v1492
    %2050 = vmatmul.mubr.bf16.gmra.mrb[0].mxu0 %v338
    %v2051 = vpop.f32.mrb[0].mxu0
    %v2052 = vadd.f32 %v277, %v2051
    %v2053 = vpop.f32.mrb[0].mxu0
    %v2054 = vadd.f32 %v277, %v2053
    %v2055 = vpop.f32.mrb[0].mxu0
    %v2056 = vadd.f32 %v282, %v2055
    %v2057 = vpop.f32.mrb[0].mxu0
    %v2058 = vadd.f32 %v282, %v2057
    %2059 = vmatprep.mubr.bf16.mxu0 %v1495
    %2060 = vmatmul.mubr.bf16.gmra.mrb[0].mxu0 %v340
    %v2061 = vpop.f32.mrb[0].mxu0
    %v2062 = vadd.f32 %v287, %v2061
    %v2063 = vpop.f32.mrb[0].mxu0
    %v2064 = vadd.f32 %v287, %v2063
    %v2065 = vpop.f32.mrb[0].mxu0
    %v2066 = vadd.f32 %v292, %v2065
    %v2067 = vpop.f32.mrb[0].mxu0
    %v2068 = vadd.f32 %v292, %v2067
    %2069 = vmatprep.mubr.bf16.mxu0 %v1498
    %2070 = vmatmul.mubr.bf16.gmra.mrb[0].mxu0 %v342
    %v2071 = vpop.f32.mrb[0].mxu0
    %v2072 = vadd.f32 %v297, %v2071
    %v2073 = vpop.f32.mrb[0].mxu0
    %v2074 = vadd.f32 %v297, %v2073
    %v2075 = vpop.f32.mrb[0].mxu0
    %v2076 = vadd.f32 %v302, %v2075
    %v2077 = vpop.f32.mrb[0].mxu0
    %v2078 = vadd.f32 %v302, %v2077
    %2079 = vmatprep.mubr.bf16.mxu0 %v1501
    %2080 = vmatmul.mubr.bf16.gmra.mrb[0].mxu0 %v344
    %v2081 = vpop.f32.mrb[0].mxu0
    %v2082 = vadd.f32 %v307, %v2081
    %v2083 = vpop.f32.mrb[0].mxu0
    %v2084 = vadd.f32 %v307, %v2083
    %v2085 = vpop.f32.mrb[0].mxu0
    %v2086 = vadd.f32 %v312, %v2085
    %v2087 = vpop.f32.mrb[0].mxu0
    %v2088 = vadd.f32 %v312, %v2087
    %2089 = vdwg.mxu0
    %2090 = vmatprep.subr.bf16.mxu0 %v1049
    %2091 = vmatpush1.bf16.msra.mxu0 %v1048
    %2092 = vmatprep.subr.bf16.mxu0 %v1073
    %2093 = vmatpush1.bf16.msra.mxu0 %v1072
    %2094 = vmatprep.subr.bf16.mxu0 %v1097
    %2095 = vmatpush1.bf16.msra.mxu0 %v1096
    %2096 = vmatprep.subr.bf16.mxu0 %v1121
    %2097 = vmatpush1.bf16.msra.mxu0 %v1120
    %2098 = vmatprep.subr.bf16.mxu0 %v1145
    %2099 = vmatpush1.bf16.msra.mxu0 %v1144
    %2100 = vmatprep.subr.bf16.mxu0 %v1169
    %2101 = vmatpush1.bf16.msra.mxu0 %v1168
    %2102 = vmatprep.subr.bf16.mxu0 %v1193
    %2103 = vmatpush1.bf16.msra.mxu0 %v1192
    %2104 = vmatprep.subr.bf16.mxu0 %v1217
    %2105 = vmatpush1.bf16.msra.mxu0 %v1216
    %2106 = vmatprep.subr.bf16.mxu0 %v1241
    %2107 = vmatpush1.bf16.msra.mxu0 %v1240
    %2108 = vmatprep.subr.bf16.mxu0 %v1553
    %2109 = vmatpush1.bf16.msra.mxu0 %v1550
    %2110 = vmatprep.subr.bf16.mxu0 0
    %2111 = vmatpush1.bf16.msra.mxu0 0
    %2112 = vmatprep.subr.bf16.mxu0 0
    %2113 = vmatpush1.bf16.msra.mxu0 0
    %2114 = vmatprep.subr.bf16.mxu0 0
    %2115 = vmatpush1.bf16.msra.mxu0 0
    %2116 = vmatprep.subr.bf16.mxu0 0
    %2117 = vmatpush1.bf16.msra.mxu0 0
    %2118 = vmatprep.subr.bf16.mxu0 0
    %2119 = vmatpush1.bf16.msra.mxu0 0
    %2120 = vmatprep.subr.bf16.mxu0 0
    %2121 = vmatpush1.bf16.msra.mxu0 0
    %2122 = vmatprep.mubr.bf16.mxu0 %v1492
    %2123 = vmatmul.mubr.bf16.gmra.mrb[0].mxu0 %v338
    %v2124 = vpop.f32.mrb[0].mxu0
    %v2125 = vadd.f32 %v277, %v2124
    %v2126 = vpop.f32.mrb[0].mxu0
    %v2127 = vadd.f32 %v277, %v2126
    %v2128 = vpop.f32.mrb[0].mxu0
    %v2129 = vadd.f32 %v282, %v2128
    %v2130 = vpop.f32.mrb[0].mxu0
    %v2131 = vadd.f32 %v282, %v2130
    %2132 = vmatprep.mubr.bf16.mxu0 %v1495
    %2133 = vmatmul.mubr.bf16.gmra.mrb[0].mxu0 %v340
    %v2134 = vpop.f32.mrb[0].mxu0
    %v2135 = vadd.f32 %v287, %v2134
    %v2136 = vpop.f32.mrb[0].mxu0
    %v2137 = vadd.f32 %v287, %v2136
    %v2138 = vpop.f32.mrb[0].mxu0
    %v2139 = vadd.f32 %v292, %v2138
    %v2140 = vpop.f32.mrb[0].mxu0
    %v2141 = vadd.f32 %v292, %v2140
    %2142 = vmatprep.mubr.bf16.mxu0 %v1498
    %2143 = vmatmul.mubr.bf16.gmra.mrb[0].mxu0 %v342
    %v2144 = vpop.f32.mrb[0].mxu0
    %v2145 = vadd.f32 %v297, %v2144
    %v2146 = vpop.f32.mrb[0].mxu0
    %v2147 = vadd.f32 %v297, %v2146
    %v2148 = vpop.f32.mrb[0].mxu0
    %v2149 = vadd.f32 %v302, %v2148
    %v2150 = vpop.f32.mrb[0].mxu0
    %v2151 = vadd.f32 %v302, %v2150
    %2152 = vmatprep.mubr.bf16.mxu0 %v1501
    %2153 = vmatmul.mubr.bf16.gmra.mrb[0].mxu0 %v344
    %v2154 = vpop.f32.mrb[0].mxu0
    %v2155 = vadd.f32 %v307, %v2154
    %v2156 = vpop.f32.mrb[0].mxu0
    %v2157 = vadd.f32 %v307, %v2156
    %v2158 = vpop.f32.mrb[0].mxu0
    %v2159 = vadd.f32 %v312, %v2158
    %v2160 = vpop.f32.mrb[0].mxu0
    %v2161 = vadd.f32 %v312, %v2160
    %2162 = vdwg.mxu0
    %2163 = vmatprep.subr.bf16.mxu0 %v1051
    %2164 = vmatpush1.bf16.msra.mxu0 %v1050
    %2165 = vmatprep.subr.bf16.mxu0 %v1075
    %2166 = vmatpush1.bf16.msra.mxu0 %v1074
    %2167 = vmatprep.subr.bf16.mxu0 %v1099
    %2168 = vmatpush1.bf16.msra.mxu0 %v1098
    %2169 = vmatprep.subr.bf16.mxu0 %v1123
    %2170 = vmatpush1.bf16.msra.mxu0 %v1122
    %2171 = vmatprep.subr.bf16.mxu0 %v1147
    %2172 = vmatpush1.bf16.msra.mxu0 %v1146
    %2173 = vmatprep.subr.bf16.mxu0 %v1171
    %2174 = vmatpush1.bf16.msra.mxu0 %v1170
    %2175 = vmatprep.subr.bf16.mxu0 %v1195
    %2176 = vmatpush1.bf16.msra.mxu0 %v1194
    %2177 = vmatprep.subr.bf16.mxu0 %v1219
    %2178 = vmatpush1.bf16.msra.mxu0 %v1218
    %2179 = vmatprep.subr.bf16.mxu0 %v1243
    %2180 = vmatpush1.bf16.msra.mxu0 %v1242
    %2181 = vmatprep.subr.bf16.mxu0 %v1559
    %2182 = vmatpush1.bf16.msra.mxu0 %v1556
    %2183 = vmatprep.subr.bf16.mxu0 0
    %2184 = vmatpush1.bf16.msra.mxu0 0
    %2185 = vmatprep.subr.bf16.mxu0 0
    %2186 = vmatpush1.bf16.msra.mxu0 0
    %2187 = vmatprep.subr.bf16.mxu0 0
    %2188 = vmatpush1.bf16.msra.mxu0 0
    %2189 = vmatprep.subr.bf16.mxu0 0
    %2190 = vmatpush1.bf16.msra.mxu0 0
    %2191 = vmatprep.subr.bf16.mxu0 0
    %2192 = vmatpush1.bf16.msra.mxu0 0
    %2193 = vmatprep.subr.bf16.mxu0 0
    %2194 = vmatpush1.bf16.msra.mxu0 0
    %2195 = vmatprep.mubr.bf16.mxu0 %v1492
    %2196 = vmatmul.mubr.bf16.gmra.mrb[0].mxu0 %v338
    %v2197 = vpop.f32.mrb[0].mxu0
    %v2198 = vadd.f32 %v277, %v2197
    %v2199 = vpop.f32.mrb[0].mxu0
    %v2200 = vadd.f32 %v277, %v2199
    %v2201 = vpop.f32.mrb[0].mxu0
    %v2202 = vadd.f32 %v282, %v2201
    %v2203 = vpop.f32.mrb[0].mxu0
    %v2204 = vadd.f32 %v282, %v2203
    %2205 = vmatprep.mubr.bf16.mxu0 %v1495
    %2206 = vmatmul.mubr.bf16.gmra.mrb[0].mxu0 %v340
    %v2207 = vpop.f32.mrb[0].mxu0
    %v2208 = vadd.f32 %v287, %v2207
    %v2209 = vpop.f32.mrb[0].mxu0
    %v2210 = vadd.f32 %v287, %v2209
    %v2211 = vpop.f32.mrb[0].mxu0
    %v2212 = vadd.f32 %v292, %v2211
    %v2213 = vpop.f32.mrb[0].mxu0
    %v2214 = vadd.f32 %v292, %v2213
    %2215 = vmatprep.mubr.bf16.mxu0 %v1498
    %2216 = vmatmul.mubr.bf16.gmra.mrb[0].mxu0 %v342
    %v2217 = vpop.f32.mrb[0].mxu0
    %v2218 = vadd.f32 %v297, %v2217
    %v2219 = vpop.f32.mrb[0].mxu0
    %v2220 = vadd.f32 %v297, %v2219
    %v2221 = vpop.f32.mrb[0].mxu0
    %v2222 = vadd.f32 %v302, %v2221
    %v2223 = vpop.f32.mrb[0].mxu0
    %v2224 = vadd.f32 %v302, %v2223
    %2225 = vmatprep.mubr.bf16.mxu0 %v1501
    %2226 = vmatmul.mubr.bf16.gmra.mrb[0].mxu0 %v344
    %v2227 = vpop.f32.mrb[0].mxu0
    %v2228 = vadd.f32 %v307, %v2227
    %v2229 = vpop.f32.mrb[0].mxu0
    %v2230 = vadd.f32 %v307, %v2229
    %v2231 = vpop.f32.mrb[0].mxu0
    %v2232 = vadd.f32 %v312, %v2231
    %v2233 = vpop.f32.mrb[0].mxu0
    %v2234 = vadd.f32 %v312, %v2233
    %2235 = vdwg.mxu0
    %2236 = vmatprep.subr.bf16.mxu0 %v1053
    %2237 = vmatpush1.bf16.msra.mxu0 %v1052
    %2238 = vmatprep.subr.bf16.mxu0 %v1077
    %2239 = vmatpush1.bf16.msra.mxu0 %v1076
    %2240 = vmatprep.subr.bf16.mxu0 %v1101
    %2241 = vmatpush1.bf16.msra.mxu0 %v1100
    %2242 = vmatprep.subr.bf16.mxu0 %v1125
    %2243 = vmatpush1.bf16.msra.mxu0 %v1124
    %2244 = vmatprep.subr.bf16.mxu0 %v1149
    %2245 = vmatpush1.bf16.msra.mxu0 %v1148
    %2246 = vmatprep.subr.bf16.mxu0 %v1173
    %2247 = vmatpush1.bf16.msra.mxu0 %v1172
    %2248 = vmatprep.subr.bf16.mxu0 %v1197
    %2249 = vmatpush1.bf16.msra.mxu0 %v1196
    %2250 = vmatprep.subr.bf16.mxu0 %v1221
    %2251 = vmatpush1.bf16.msra.mxu0 %v1220
    %2252 = vmatprep.subr.bf16.mxu0 %v1245
    %2253 = vmatpush1.bf16.msra.mxu0 %v1244
    %2254 = vmatprep.subr.bf16.mxu0 %v1565
    %2255 = vmatpush1.bf16.msra.mxu0 %v1562
    %2256 = vmatprep.subr.bf16.mxu0 0
    %2257 = vmatpush1.bf16.msra.mxu0 0
    %2258 = vmatprep.subr.bf16.mxu0 0
    %2259 = vmatpush1.bf16.msra.mxu0 0
    %2260 = vmatprep.subr.bf16.mxu0 0
    %2261 = vmatpush1.bf16.msra.mxu0 0
    %2262 = vmatprep.subr.bf16.mxu0 0
    %2263 = vmatpush1.bf16.msra.mxu0 0
    %2264 = vmatprep.subr.bf16.mxu0 0
    %2265 = vmatpush1.bf16.msra.mxu0 0
    %2266 = vmatprep.subr.bf16.mxu0 0
    %2267 = vmatpush1.bf16.msra.mxu0 0
    %2268 = vmatprep.mubr.bf16.mxu0 %v1492
    %2269 = vmatmul.mubr.bf16.gmra.mrb[0].mxu0 %v338
    %v2270 = vpop.f32.mrb[0].mxu0
    %v2271 = vadd.f32 %v277, %v2270
    %v2272 = vpop.f32.mrb[0].mxu0
    %v2273 = vadd.f32 %v277, %v2272
    %v2274 = vpop.f32.mrb[0].mxu0
    %v2275 = vadd.f32 %v282, %v2274
    %v2276 = vpop.f32.mrb[0].mxu0
    %v2277 = vadd.f32 %v282, %v2276
    %2278 = vmatprep.mubr.bf16.mxu0 %v1495
    %2279 = vmatmul.mubr.bf16.gmra.mrb[0].mxu0 %v340
    %v2280 = vpop.f32.mrb[0].mxu0
    %v2281 = vadd.f32 %v287, %v2280
    %v2282 = vpop.f32.mrb[0].mxu0
    %v2283 = vadd.f32 %v287, %v2282
    %v2284 = vpop.f32.mrb[0].mxu0
    %v2285 = vadd.f32 %v292, %v2284
    %v2286 = vpop.f32.mrb[0].mxu0
    %v2287 = vadd.f32 %v292, %v2286
    %2288 = vmatprep.mubr.bf16.mxu0 %v1498
    %2289 = vmatmul.mubr.bf16.gmra.mrb[0].mxu0 %v342
    %v2290 = vpop.f32.mrb[0].mxu0
    %v2291 = vadd.f32 %v297, %v2290
    %v2292 = vpop.f32.mrb[0].mxu0
    %v2293 = vadd.f32 %v297, %v2292
    %v2294 = vpop.f32.mrb[0].mxu0
    %v2295 = vadd.f32 %v302, %v2294
    %v2296 = vpop.f32.mrb[0].mxu0
    %v2297 = vadd.f32 %v302, %v2296
    %2298 = vmatprep.mubr.bf16.mxu0 %v1501
    %2299 = vmatmul.mubr.bf16.gmra.mrb[0].mxu0 %v344
    %v2300 = vpop.f32.mrb[0].mxu0
    %v2301 = vadd.f32 %v307, %v2300
    %v2302 = vpop.f32.mrb[0].mxu0
    %v2303 = vadd.f32 %v307, %v2302
    %v2304 = vpop.f32.mrb[0].mxu0
    %v2305 = vadd.f32 %v312, %v2304
    %v2306 = vpop.f32.mrb[0].mxu0
    %v2307 = vadd.f32 %v312, %v2306
    %2308 = vdwg.mxu0
    %2309 = vmatprep.subr.bf16.mxu0 %v1055
    %2310 = vmatpush1.bf16.msra.mxu0 %v1054
    %2311 = vmatprep.subr.bf16.mxu0 %v1079
    %2312 = vmatpush1.bf16.msra.mxu0 %v1078
    %2313 = vmatprep.subr.bf16.mxu0 %v1103
    %2314 = vmatpush1.bf16.msra.mxu0 %v1102
    %2315 = vmatprep.subr.bf16.mxu0 %v1127
    %2316 = vmatpush1.bf16.msra.mxu0 %v1126
    %2317 = vmatprep.subr.bf16.mxu0 %v1151
    %2318 = vmatpush1.bf16.msra.mxu0 %v1150
    %2319 = vmatprep.subr.bf16.mxu0 %v1175
    %2320 = vmatpush1.bf16.msra.mxu0 %v1174
    %2321 = vmatprep.subr.bf16.mxu0 %v1199
    %2322 = vmatpush1.bf16.msra.mxu0 %v1198
    %2323 = vmatprep.subr.bf16.mxu0 %v1223
    %2324 = vmatpush1.bf16.msra.mxu0 %v1222
    %2325 = vmatprep.subr.bf16.mxu0 %v1247
    %2326 = vmatpush1.bf16.msra.mxu0 %v1246
    %2327 = vmatprep.subr.bf16.mxu0 %v1571
    %2328 = vmatpush1.bf16.msra.mxu0 %v1568
    %2329 = vmatprep.subr.bf16.mxu0 0
    %2330 = vmatpush1.bf16.msra.mxu0 0
    %2331 = vmatprep.subr.bf16.mxu0 0
    %2332 = vmatpush1.bf16.msra.mxu0 0
    %2333 = vmatprep.subr.bf16.mxu0 0
    %2334 = vmatpush1.bf16.msra.mxu0 0
    %2335 = vmatprep.subr.bf16.mxu0 0
    %2336 = vmatpush1.bf16.msra.mxu0 0
    %2337 = vmatprep.subr.bf16.mxu0 0
    %2338 = vmatpush1.bf16.msra.mxu0 0
    %2339 = vmatprep.subr.bf16.mxu0 0
    %2340 = vmatpush1.bf16.msra.mxu0 0
    %2341 = vmatprep.mubr.bf16.mxu0 %v1492
    %2342 = vmatmul.mubr.bf16.gmra.mrb[0].mxu0 %v338
    %v2343 = vpop.f32.mrb[0].mxu0
    %v2344 = vadd.f32 %v277, %v2343
    %v2345 = vpop.f32.mrb[0].mxu0
    %v2346 = vadd.f32 %v277, %v2345
    %v2347 = vpop.f32.mrb[0].mxu0
    %v2348 = vadd.f32 %v282, %v2347
    %v2349 = vpop.f32.mrb[0].mxu0
    %v2350 = vadd.f32 %v282, %v2349
    %2351 = vmatprep.mubr.bf16.mxu0 %v1495
    %2352 = vmatmul.mubr.bf16.gmra.mrb[0].mxu0 %v340
    %v2353 = vpop.f32.mrb[0].mxu0
    %v2354 = vadd.f32 %v287, %v2353
    %v2355 = vpop.f32.mrb[0].mxu0
    %v2356 = vadd.f32 %v287, %v2355
    %v2357 = vpop.f32.mrb[0].mxu0
    %v2358 = vadd.f32 %v292, %v2357
    %v2359 = vpop.f32.mrb[0].mxu0
    %v2360 = vadd.f32 %v292, %v2359
    %2361 = vmatprep.mubr.bf16.mxu0 %v1498
    %2362 = vmatmul.mubr.bf16.gmra.mrb[0].mxu0 %v342
    %v2363 = vpop.f32.mrb[0].mxu0
    %v2364 = vadd.f32 %v297, %v2363
    %v2365 = vpop.f32.mrb[0].mxu0
    %v2366 = vadd.f32 %v297, %v2365
    %v2367 = vpop.f32.mrb[0].mxu0
    %v2368 = vadd.f32 %v302, %v2367
    %v2369 = vpop.f32.mrb[0].mxu0
    %v2370 = vadd.f32 %v302, %v2369
    %2371 = vmatprep.mubr.bf16.mxu0 %v1501
    %2372 = vmatmul.mubr.bf16.gmra.mrb[0].mxu0 %v344
    %v2373 = vpop.f32.mrb[0].mxu0
    %v2374 = vadd.f32 %v307, %v2373
    %v2375 = vpop.f32.mrb[0].mxu0
    %v2376 = vadd.f32 %v307, %v2375
    %v2377 = vpop.f32.mrb[0].mxu0
    %v2378 = vadd.f32 %v312, %v2377
    %v2379 = vpop.f32.mrb[0].mxu0
    %v2380 = vadd.f32 %v312, %v2379
    %2381 = vdwg.mxu0
    %2382 = vmatprep.subr.bf16.mxu0 %v1057
    %2383 = vmatpush1.bf16.msra.mxu0 %v1056
    %2384 = vmatprep.subr.bf16.mxu0 %v1081
    %2385 = vmatpush1.bf16.msra.mxu0 %v1080
    %2386 = vmatprep.subr.bf16.mxu0 %v1105
    %2387 = vmatpush1.bf16.msra.mxu0 %v1104
    %2388 = vmatprep.subr.bf16.mxu0 %v1129
    %2389 = vmatpush1.bf16.msra.mxu0 %v1128
    %2390 = vmatprep.subr.bf16.mxu0 %v1153
    %2391 = vmatpush1.bf16.msra.mxu0 %v1152
    %2392 = vmatprep.subr.bf16.mxu0 %v1177
    %2393 = vmatpush1.bf16.msra.mxu0 %v1176
    %2394 = vmatprep.subr.bf16.mxu0 %v1201
    %2395 = vmatpush1.bf16.msra.mxu0 %v1200
    %2396 = vmatprep.subr.bf16.mxu0 %v1225
    %2397 = vmatpush1.bf16.msra.mxu0 %v1224
    %2398 = vmatprep.subr.bf16.mxu0 %v1249
    %2399 = vmatpush1.bf16.msra.mxu0 %v1248
    %2400 = vmatprep.subr.bf16.mxu0 %v1577
    %2401 = vmatpush1.bf16.msra.mxu0 %v1574
    %2402 = vmatprep.subr.bf16.mxu0 0
    %2403 = vmatpush1.bf16.msra.mxu0 0
    %2404 = vmatprep.subr.bf16.mxu0 0
    %2405 = vmatpush1.bf16.msra.mxu0 0
    %2406 = vmatprep.subr.bf16.mxu0 0
    %2407 = vmatpush1.bf16.msra.mxu0 0
    %2408 = vmatprep.subr.bf16.mxu0 0
    %2409 = vmatpush1.bf16.msra.mxu0 0
    %2410 = vmatprep.subr.bf16.mxu0 0
    %2411 = vmatpush1.bf16.msra.mxu0 0
    %2412 = vmatprep.subr.bf16.mxu0 0
    %2413 = vmatpush1.bf16.msra.mxu0 0
    %2414 = vmatprep.mubr.bf16.mxu0 %v1492
    %2415 = vmatmul.mubr.bf16.gmra.mrb[0].mxu0 %v338
    %v2416 = vpop.f32.mrb[0].mxu0
    %v2417 = vadd.f32 %v277, %v2416
    %v2418 = vpop.f32.mrb[0].mxu0
    %v2419 = vadd.f32 %v277, %v2418
    %v2420 = vpop.f32.mrb[0].mxu0
    %v2421 = vadd.f32 %v282, %v2420
    %v2422 = vpop.f32.mrb[0].mxu0
    %v2423 = vadd.f32 %v282, %v2422
    %2424 = vmatprep.mubr.bf16.mxu0 %v1495
    %2425 = vmatmul.mubr.bf16.gmra.mrb[0].mxu0 %v340
    %v2426 = vpop.f32.mrb[0].mxu0
    %v2427 = vadd.f32 %v287, %v2426
    %v2428 = vpop.f32.mrb[0].mxu0
    %v2429 = vadd.f32 %v287, %v2428
    %v2430 = vpop.f32.mrb[0].mxu0
    %v2431 = vadd.f32 %v292, %v2430
    %v2432 = vpop.f32.mrb[0].mxu0
    %v2433 = vadd.f32 %v292, %v2432
    %2434 = vmatprep.mubr.bf16.mxu0 %v1498
    %2435 = vmatmul.mubr.bf16.gmra.mrb[0].mxu0 %v342
    %v2436 = vpop.f32.mrb[0].mxu0
    %v2437 = vadd.f32 %v297, %v2436
    %v2438 = vpop.f32.mrb[0].mxu0
    %v2439 = vadd.f32 %v297, %v2438
    %v2440 = vpop.f32.mrb[0].mxu0
    %v2441 = vadd.f32 %v302, %v2440
    %v2442 = vpop.f32.mrb[0].mxu0
    %v2443 = vadd.f32 %v302, %v2442
    %2444 = vmatprep.mubr.bf16.mxu0 %v1501
    %2445 = vmatmul.mubr.bf16.gmra.mrb[0].mxu0 %v344
    %v2446 = vpop.f32.mrb[0].mxu0
    %v2447 = vadd.f32 %v307, %v2446
    %v2448 = vpop.f32.mrb[0].mxu0
    %v2449 = vadd.f32 %v307, %v2448
    %v2450 = vpop.f32.mrb[0].mxu0
    %v2451 = vadd.f32 %v312, %v2450
    %v2452 = vpop.f32.mrb[0].mxu0
    %v2453 = vadd.f32 %v312, %v2452
    %2454 = vdwg.mxu0
    %v2455 = vmax.f32 %v1614, 0.0
    %v2456 = vmax.f32 %v1616, 0.0
    %v2457 = vmax.f32 %v1687, 0.0
    %v2458 = vmax.f32 %v1689, 0.0
    %v2459 = vmax.f32 %v1760, 0.0
    %v2460 = vmax.f32 %v1762, 0.0
    %v2461 = vmax.f32 %v1833, 0.0
    %v2462 = vmax.f32 %v1835, 0.0
    %v2463 = vmax.f32 %v1906, 0.0
    %v2464 = vmax.f32 %v1908, 0.0
    %v2465 = vmax.f32 %v1979, 0.0
    %v2466 = vmax.f32 %v1981, 0.0
    %v2467 = vmax.f32 %v2052, 0.0
    %v2468 = vmax.f32 %v2054, 0.0
    %v2469 = vmax.f32 %v2125, 0.0
    %v2470 = vmax.f32 %v2127, 0.0
    %v2471 = vmax.f32 %v2198, 0.0
    %v2472 = vmax.f32 %v2200, 0.0
    %v2473 = vmax.f32 %v2271, 0.0
    %v2474 = vmax.f32 %v2273, 0.0
    %v2475 = vmax.f32 %v2344, 0.0
    %v2476 = vmax.f32 %v2346, 0.0
    %v2477 = vmax.f32 %v2417, 0.0
    %v2478 = vmax.f32 %v2419, 0.0
    %v2479 = vmax.f32 %v1618, 0.0
    %v2480 = vmax.f32 %v1620, 0.0
    %v2481 = vmax.f32 %v1691, 0.0
    %v2482 = vmax.f32 %v1693, 0.0
    %v2483 = vmax.f32 %v1764, 0.0
    %v2484 = vmax.f32 %v1766, 0.0
    %v2485 = vmax.f32 %v1837, 0.0
    %v2486 = vmax.f32 %v1839, 0.0
    %v2487 = vmax.f32 %v1910, 0.0
    %v2488 = vmax.f32 %v1912, 0.0
    %v2489 = vmax.f32 %v1983, 0.0
    %v2490 = vmax.f32 %v1985, 0.0
    %v2491 = vmax.f32 %v2056, 0.0
    %v2492 = vmax.f32 %v2058, 0.0
    %v2493 = vmax.f32 %v2129, 0.0
    %v2494 = vmax.f32 %v2131, 0.0
    %v2495 = vmax.f32 %v2202, 0.0
    %v2496 = vmax.f32 %v2204, 0.0
    %v2497 = vmax.f32 %v2275, 0.0
    %v2498 = vmax.f32 %v2277, 0.0
    %v2499 = vmax.f32 %v2348, 0.0
    %v2500 = vmax.f32 %v2350, 0.0
    %v2501 = vmax.f32 %v2421, 0.0
    %v2502 = vmax.f32 %v2423, 0.0
    %v2503 = vmax.f32 %v1624, 0.0
    %v2504 = vmax.f32 %v1626, 0.0
    %v2505 = vmax.f32 %v1697, 0.0
    %v2506 = vmax.f32 %v1699, 0.0
    %v2507 = vmax.f32 %v1770, 0.0
    %v2508 = vmax.f32 %v1772, 0.0
    %v2509 = vmax.f32 %v1843, 0.0
    %v2510 = vmax.f32 %v1845, 0.0
    %v2511 = vmax.f32 %v1916, 0.0
    %v2512 = vmax.f32 %v1918, 0.0
    %v2513 = vmax.f32 %v1989, 0.0
    %v2514 = vmax.f32 %v1991, 0.0
    %v2515 = vmax.f32 %v2062, 0.0
    %v2516 = vmax.f32 %v2064, 0.0
    %v2517 = vmax.f32 %v2135, 0.0
    %v2518 = vmax.f32 %v2137, 0.0
    %v2519 = vmax.f32 %v2208, 0.0
    %v2520 = vmax.f32 %v2210, 0.0
    %v2521 = vmax.f32 %v2281, 0.0
    %v2522 = vmax.f32 %v2283, 0.0
    %v2523 = vmax.f32 %v2354, 0.0
    %v2524 = vmax.f32 %v2356, 0.0
    %v2525 = vmax.f32 %v2427, 0.0
    %v2526 = vmax.f32 %v2429, 0.0
    %v2527 = vmax.f32 %v1628, 0.0
    %v2528 = vmax.f32 %v1630, 0.0
    %v2529 = vmax.f32 %v1701, 0.0
    %v2530 = vmax.f32 %v1703, 0.0
    %v2531 = vmax.f32 %v1774, 0.0
    %v2532 = vmax.f32 %v1776, 0.0
    %v2533 = vmax.f32 %v1847, 0.0
    %v2534 = vmax.f32 %v1849, 0.0
    %v2535 = vmax.f32 %v1920, 0.0
    %v2536 = vmax.f32 %v1922, 0.0
    %v2537 = vmax.f32 %v1993, 0.0
    %v2538 = vmax.f32 %v1995, 0.0
    %v2539 = vmax.f32 %v2066, 0.0
    %v2540 = vmax.f32 %v2068, 0.0
    %v2541 = vmax.f32 %v2139, 0.0
    %v2542 = vmax.f32 %v2141, 0.0
    %v2543 = vmax.f32 %v2212, 0.0
    %v2544 = vmax.f32 %v2214, 0.0
    %v2545 = vmax.f32 %v2285, 0.0
    %v2546 = vmax.f32 %v2287, 0.0
    %v2547 = vmax.f32 %v2358, 0.0
    %v2548 = vmax.f32 %v2360, 0.0
    %v2549 = vmax.f32 %v2431, 0.0
    %v2550 = vmax.f32 %v2433, 0.0
    %v2551 = vmax.f32 %v1634, 0.0
    %v2552 = vmax.f32 %v1636, 0.0
    %v2553 = vmax.f32 %v1707, 0.0
    %v2554 = vmax.f32 %v1709, 0.0
    %v2555 = vmax.f32 %v1780, 0.0
    %v2556 = vmax.f32 %v1782, 0.0
    %v2557 = vmax.f32 %v1853, 0.0
    %v2558 = vmax.f32 %v1855, 0.0
    %v2559 = vmax.f32 %v1926, 0.0
    %v2560 = vmax.f32 %v1928, 0.0
    %v2561 = vmax.f32 %v1999, 0.0
    %v2562 = vmax.f32 %v2001, 0.0
    %v2563 = vmax.f32 %v2072, 0.0
    %v2564 = vmax.f32 %v2074, 0.0
    %v2565 = vmax.f32 %v2145, 0.0
    %v2566 = vmax.f32 %v2147, 0.0
    %v2567 = vmax.f32 %v2218, 0.0
    %v2568 = vmax.f32 %v2220, 0.0
    %v2569 = vmax.f32 %v2291, 0.0
    %v2570 = vmax.f32 %v2293, 0.0
    %v2571 = vmax.f32 %v2364, 0.0
    %v2572 = vmax.f32 %v2366, 0.0
    %v2573 = vmax.f32 %v2437, 0.0
    %v2574 = vmax.f32 %v2439, 0.0
    %v2575 = vmax.f32 %v1638, 0.0
    %v2576 = vmax.f32 %v1640, 0.0
    %v2577 = vmax.f32 %v1711, 0.0
    %v2578 = vmax.f32 %v1713, 0.0
    %v2579 = vmax.f32 %v1784, 0.0
    %v2580 = vmax.f32 %v1786, 0.0
    %v2581 = vmax.f32 %v1857, 0.0
    %v2582 = vmax.f32 %v1859, 0.0
    %v2583 = vmax.f32 %v1930, 0.0
    %v2584 = vmax.f32 %v1932, 0.0
    %v2585 = vmax.f32 %v2003, 0.0
    %v2586 = vmax.f32 %v2005, 0.0
    %v2587 = vmax.f32 %v2076, 0.0
    %v2588 = vmax.f32 %v2078, 0.0
    %v2589 = vmax.f32 %v2149, 0.0
    %v2590 = vmax.f32 %v2151, 0.0
    %v2591 = vmax.f32 %v2222, 0.0
    %v2592 = vmax.f32 %v2224, 0.0
    %v2593 = vmax.f32 %v2295, 0.0
    %v2594 = vmax.f32 %v2297, 0.0
    %v2595 = vmax.f32 %v2368, 0.0
    %v2596 = vmax.f32 %v2370, 0.0
    %v2597 = vmax.f32 %v2441, 0.0
    %v2598 = vmax.f32 %v2443, 0.0
    %v2599 = vmax.f32 %v1644, 0.0
    %v2600 = vmax.f32 %v1646, 0.0
    %v2601 = vmax.f32 %v1717, 0.0
    %v2602 = vmax.f32 %v1719, 0.0
    %v2603 = vmax.f32 %v1790, 0.0
    %v2604 = vmax.f32 %v1792, 0.0
    %v2605 = vmax.f32 %v1863, 0.0
    %v2606 = vmax.f32 %v1865, 0.0
    %v2607 = vmax.f32 %v1936, 0.0
    %v2608 = vmax.f32 %v1938, 0.0
    %v2609 = vmax.f32 %v2009, 0.0
    %v2610 = vmax.f32 %v2011, 0.0
    %v2611 = vmax.f32 %v2082, 0.0
    %v2612 = vmax.f32 %v2084, 0.0
    %v2613 = vmax.f32 %v2155, 0.0
    %v2614 = vmax.f32 %v2157, 0.0
    %v2615 = vmax.f32 %v2228, 0.0
    %v2616 = vmax.f32 %v2230, 0.0
    %v2617 = vmax.f32 %v2301, 0.0
    %v2618 = vmax.f32 %v2303, 0.0
    %v2619 = vmax.f32 %v2374, 0.0
    %v2620 = vmax.f32 %v2376, 0.0
    %v2621 = vmax.f32 %v2447, 0.0
    %v2622 = vmax.f32 %v2449, 0.0
    %v2623 = vmax.f32 %v1648, 0.0
    %v2624 = vmax.f32 %v1650, 0.0
    %v2625 = vmax.f32 %v1721, 0.0
    %v2626 = vmax.f32 %v1723, 0.0
    %v2627 = vmax.f32 %v1794, 0.0
    %v2628 = vmax.f32 %v1796, 0.0
    %v2629 = vmax.f32 %v1867, 0.0
    %v2630 = vmax.f32 %v1869, 0.0
    %v2631 = vmax.f32 %v1940, 0.0
    %v2632 = vmax.f32 %v1942, 0.0
    %v2633 = vmax.f32 %v2013, 0.0
    %v2634 = vmax.f32 %v2015, 0.0
    %v2635 = vmax.f32 %v2086, 0.0
    %v2636 = vmax.f32 %v2088, 0.0
    %v2637 = vmax.f32 %v2159, 0.0
    %v2638 = vmax.f32 %v2161, 0.0
    %v2639 = vmax.f32 %v2232, 0.0
    %v2640 = vmax.f32 %v2234, 0.0
    %v2641 = vmax.f32 %v2305, 0.0
    %v2642 = vmax.f32 %v2307, 0.0
    %v2643 = vmax.f32 %v2378, 0.0
    %v2644 = vmax.f32 %v2380, 0.0
    %v2645 = vmax.f32 %v2451, 0.0
    %v2646 = vmax.f32 %v2453, 0.0
    %v2647 = vpack.c.bf16 %v2479, %v2455
    %v2648 = vpack.c.bf16 %v2480, %v2456
    %v2649 = vpack.c.bf16 %v2481, %v2457
    %v2650 = vpack.c.bf16 %v2482, %v2458
    %v2651 = vpack.c.bf16 %v2483, %v2459
    %v2652 = vpack.c.bf16 %v2484, %v2460
    %v2653 = vpack.c.bf16 %v2485, %v2461
    %v2654 = vpack.c.bf16 %v2486, %v2462
    %v2655 = vpack.c.bf16 %v2487, %v2463
    %v2656 = vpack.c.bf16 %v2488, %v2464
    %v2657 = vpack.c.bf16 %v2489, %v2465
    %v2658 = vpack.c.bf16 %v2490, %v2466
    %v2659 = vpack.c.bf16 %v2491, %v2467
    %v2660 = vpack.c.bf16 %v2492, %v2468
    %v2661 = vpack.c.bf16 %v2493, %v2469
    %v2662 = vpack.c.bf16 %v2494, %v2470
    %v2663 = vpack.c.bf16 %v2495, %v2471
    %v2664 = vpack.c.bf16 %v2496, %v2472
    %v2665 = vpack.c.bf16 %v2497, %v2473
    %v2666 = vpack.c.bf16 %v2498, %v2474
    %v2667 = vpack.c.bf16 %v2499, %v2475
    %v2668 = vpack.c.bf16 %v2500, %v2476
    %v2669 = vpack.c.bf16 %v2501, %v2477
    %v2670 = vpack.c.bf16 %v2502, %v2478
    %v2671 = vpack.c.bf16 %v2527, %v2503
    %v2672 = vpack.c.bf16 %v2528, %v2504
    %v2673 = vpack.c.bf16 %v2529, %v2505
    %v2674 = vpack.c.bf16 %v2530, %v2506
    %v2675 = vpack.c.bf16 %v2531, %v2507
    %v2676 = vpack.c.bf16 %v2532, %v2508
    %v2677 = vpack.c.bf16 %v2533, %v2509
    %v2678 = vpack.c.bf16 %v2534, %v2510
    %v2679 = vpack.c.bf16 %v2535, %v2511
    %v2680 = vpack.c.bf16 %v2536, %v2512
    %v2681 = vpack.c.bf16 %v2537, %v2513
    %v2682 = vpack.c.bf16 %v2538, %v2514
    %v2683 = vpack.c.bf16 %v2539, %v2515
    %v2684 = vpack.c.bf16 %v2540, %v2516
    %v2685 = vpack.c.bf16 %v2541, %v2517
    %v2686 = vpack.c.bf16 %v2542, %v2518
    %v2687 = vpack.c.bf16 %v2543, %v2519
    %v2688 = vpack.c.bf16 %v2544, %v2520
    %v2689 = vpack.c.bf16 %v2545, %v2521
    %v2690 = vpack.c.bf16 %v2546, %v2522
    %v2691 = vpack.c.bf16 %v2547, %v2523
    %v2692 = vpack.c.bf16 %v2548, %v2524
    %v2693 = vpack.c.bf16 %v2549, %v2525
    %v2694 = vpack.c.bf16 %v2550, %v2526
    %v2695 = vpack.c.bf16 %v2575, %v2551
    %v2696 = vpack.c.bf16 %v2576, %v2552
    %v2697 = vpack.c.bf16 %v2577, %v2553
    %v2698 = vpack.c.bf16 %v2578, %v2554
    %v2699 = vpack.c.bf16 %v2579, %v2555
    %v2700 = vpack.c.bf16 %v2580, %v2556
    %v2701 = vpack.c.bf16 %v2581, %v2557
    %v2702 = vpack.c.bf16 %v2582, %v2558
    %v2703 = vpack.c.bf16 %v2583, %v2559
    %v2704 = vpack.c.bf16 %v2584, %v2560
    %v2705 = vpack.c.bf16 %v2585, %v2561
    %v2706 = vpack.c.bf16 %v2586, %v2562
    %v2707 = vpack.c.bf16 %v2587, %v2563
    %v2708 = vpack.c.bf16 %v2588, %v2564
    %v2709 = vpack.c.bf16 %v2589, %v2565
    %v2710 = vpack.c.bf16 %v2590, %v2566
    %v2711 = vpack.c.bf16 %v2591, %v2567
    %v2712 = vpack.c.bf16 %v2592, %v2568
    %v2713 = vpack.c.bf16 %v2593, %v2569
    %v2714 = vpack.c.bf16 %v2594, %v2570
    %v2715 = vpack.c.bf16 %v2595, %v2571
    %v2716 = vpack.c.bf16 %v2596, %v2572
    %v2717 = vpack.c.bf16 %v2597, %v2573
    %v2718 = vpack.c.bf16 %v2598, %v2574
    %v2719 = vpack.c.bf16 %v2623, %v2599
    %v2720 = vpack.c.bf16 %v2624, %v2600
    %v2721 = vpack.c.bf16 %v2625, %v2601
    %v2722 = vpack.c.bf16 %v2626, %v2602
    %v2723 = vpack.c.bf16 %v2627, %v2603
    %v2724 = vpack.c.bf16 %v2628, %v2604
    %v2725 = vpack.c.bf16 %v2629, %v2605
    %v2726 = vpack.c.bf16 %v2630, %v2606
    %v2727 = vpack.c.bf16 %v2631, %v2607
    %v2728 = vpack.c.bf16 %v2632, %v2608
    %v2729 = vpack.c.bf16 %v2633, %v2609
    %v2730 = vpack.c.bf16 %v2634, %v2610
    %v2731 = vpack.c.bf16 %v2635, %v2611
    %v2732 = vpack.c.bf16 %v2636, %v2612
    %v2733 = vpack.c.bf16 %v2637, %v2613
    %v2734 = vpack.c.bf16 %v2638, %v2614
    %v2735 = vpack.c.bf16 %v2639, %v2615
    %v2736 = vpack.c.bf16 %v2640, %v2616
    %v2737 = vpack.c.bf16 %v2641, %v2617
    %v2738 = vpack.c.bf16 %v2642, %v2618
    %v2739 = vpack.c.bf16 %v2643, %v2619
    %v2740 = vpack.c.bf16 %v2644, %v2620
    %v2741 = vpack.c.bf16 %v2645, %v2621
    %v2742 = vpack.c.bf16 %v2646, %v2622
    %v2839 = vunpack.c.l.b16 %v2647
    %v2840 = vunpack.c.l.b16 %v2648
    %v2841 = vunpack.c.l.b16 %v2649
    %v2842 = vunpack.c.l.b16 %v2650
    %v2843 = vunpack.c.l.b16 %v2651
    %v2844 = vunpack.c.l.b16 %v2652
    %v2845 = vunpack.c.l.b16 %v2653
    %v2846 = vunpack.c.l.b16 %v2654
    %v2847 = vunpack.c.l.b16 %v2655
    %v2848 = vunpack.c.l.b16 %v2656
    %v2849 = vunpack.c.l.b16 %v2657
    %v2850 = vunpack.c.l.b16 %v2658
    %v2851 = vunpack.c.l.b16 %v2659
    %v2852 = vunpack.c.l.b16 %v2660
    %v2853 = vunpack.c.l.b16 %v2661
    %v2854 = vunpack.c.l.b16 %v2662
    %v2855 = vunpack.c.l.b16 %v2663
    %v2856 = vunpack.c.l.b16 %v2664
    %v2857 = vunpack.c.l.b16 %v2665
    %v2858 = vunpack.c.l.b16 %v2666
    %v2859 = vunpack.c.l.b16 %v2667
    %v2860 = vunpack.c.l.b16 %v2668
    %v2861 = vunpack.c.l.b16 %v2669
    %v2862 = vunpack.c.l.b16 %v2670
    %v2863 = vunpack.c.h.b16 %v2647
    %v2864 = vunpack.c.h.b16 %v2648
    %v2865 = vunpack.c.h.b16 %v2649
    %v2866 = vunpack.c.h.b16 %v2650
    %v2867 = vunpack.c.h.b16 %v2651
    %v2868 = vunpack.c.h.b16 %v2652
    %v2869 = vunpack.c.h.b16 %v2653
    %v2870 = vunpack.c.h.b16 %v2654
    %v2871 = vunpack.c.h.b16 %v2655
    %v2872 = vunpack.c.h.b16 %v2656
    %v2873 = vunpack.c.h.b16 %v2657
    %v2874 = vunpack.c.h.b16 %v2658
    %v2875 = vunpack.c.h.b16 %v2659
    %v2876 = vunpack.c.h.b16 %v2660
    %v2877 = vunpack.c.h.b16 %v2661
    %v2878 = vunpack.c.h.b16 %v2662
    %v2879 = vunpack.c.h.b16 %v2663
    %v2880 = vunpack.c.h.b16 %v2664
    %v2881 = vunpack.c.h.b16 %v2665
    %v2882 = vunpack.c.h.b16 %v2666
    %v2883 = vunpack.c.h.b16 %v2667
    %v2884 = vunpack.c.h.b16 %v2668
    %v2885 = vunpack.c.h.b16 %v2669
    %v2886 = vunpack.c.h.b16 %v2670
    %v2887 = vunpack.c.l.b16 %v2671
    %v2888 = vunpack.c.l.b16 %v2672
    %v2889 = vunpack.c.l.b16 %v2673
    %v2890 = vunpack.c.l.b16 %v2674
    %v2891 = vunpack.c.l.b16 %v2675
    %v2892 = vunpack.c.l.b16 %v2676
    %v2893 = vunpack.c.l.b16 %v2677
    %v2894 = vunpack.c.l.b16 %v2678
    %v2895 = vunpack.c.l.b16 %v2679
    %v2896 = vunpack.c.l.b16 %v2680
    %v2897 = vunpack.c.l.b16 %v2681
    %v2898 = vunpack.c.l.b16 %v2682
    %v2899 = vunpack.c.l.b16 %v2683
    %v2900 = vunpack.c.l.b16 %v2684
    %v2901 = vunpack.c.l.b16 %v2685
    %v2902 = vunpack.c.l.b16 %v2686
    %v2903 = vunpack.c.l.b16 %v2687
    %v2904 = vunpack.c.l.b16 %v2688
    %v2905 = vunpack.c.l.b16 %v2689
    %v2906 = vunpack.c.l.b16 %v2690
    %v2907 = vunpack.c.l.b16 %v2691
    %v2908 = vunpack.c.l.b16 %v2692
    %v2909 = vunpack.c.l.b16 %v2693
    %v2910 = vunpack.c.l.b16 %v2694
    %v2911 = vunpack.c.h.b16 %v2671
    %v2912 = vunpack.c.h.b16 %v2672
    %v2913 = vunpack.c.h.b16 %v2673
    %v2914 = vunpack.c.h.b16 %v2674
    %v2915 = vunpack.c.h.b16 %v2675
    %v2916 = vunpack.c.h.b16 %v2676
    %v2917 = vunpack.c.h.b16 %v2677
    %v2918 = vunpack.c.h.b16 %v2678
    %v2919 = vunpack.c.h.b16 %v2679
    %v2920 = vunpack.c.h.b16 %v2680
    %v2921 = vunpack.c.h.b16 %v2681
    %v2922 = vunpack.c.h.b16 %v2682
    %v2923 = vunpack.c.h.b16 %v2683
    %v2924 = vunpack.c.h.b16 %v2684
    %v2925 = vunpack.c.h.b16 %v2685
    %v2926 = vunpack.c.h.b16 %v2686
    %v2927 = vunpack.c.h.b16 %v2687
    %v2928 = vunpack.c.h.b16 %v2688
    %v2929 = vunpack.c.h.b16 %v2689
    %v2930 = vunpack.c.h.b16 %v2690
    %v2931 = vunpack.c.h.b16 %v2691
    %v2932 = vunpack.c.h.b16 %v2692
    %v2933 = vunpack.c.h.b16 %v2693
    %v2934 = vunpack.c.h.b16 %v2694
    %v2935 = vunpack.c.l.b16 %v2695
    %v2936 = vunpack.c.l.b16 %v2696
    %v2937 = vunpack.c.l.b16 %v2697
    %v2938 = vunpack.c.l.b16 %v2698
    %v2939 = vunpack.c.l.b16 %v2699
    %v2940 = vunpack.c.l.b16 %v2700
    %v2941 = vunpack.c.l.b16 %v2701
    %v2942 = vunpack.c.l.b16 %v2702
    %v2943 = vunpack.c.l.b16 %v2703
    %v2944 = vunpack.c.l.b16 %v2704
    %v2945 = vunpack.c.l.b16 %v2705
    %v2946 = vunpack.c.l.b16 %v2706
    %v2947 = vunpack.c.l.b16 %v2707
    %v2948 = vunpack.c.l.b16 %v2708
    %v2949 = vunpack.c.l.b16 %v2709
    %v2950 = vunpack.c.l.b16 %v2710
    %v2951 = vunpack.c.l.b16 %v2711
    %v2952 = vunpack.c.l.b16 %v2712
    %v2953 = vunpack.c.l.b16 %v2713
    %v2954 = vunpack.c.l.b16 %v2714
    %v2955 = vunpack.c.l.b16 %v2715
    %v2956 = vunpack.c.l.b16 %v2716
    %v2957 = vunpack.c.l.b16 %v2717
    %v2958 = vunpack.c.l.b16 %v2718
    %v2959 = vunpack.c.h.b16 %v2695
    %v2960 = vunpack.c.h.b16 %v2696
    %v2961 = vunpack.c.h.b16 %v2697
    %v2962 = vunpack.c.h.b16 %v2698
    %v2963 = vunpack.c.h.b16 %v2699
    %v2964 = vunpack.c.h.b16 %v2700
    %v2965 = vunpack.c.h.b16 %v2701
    %v2966 = vunpack.c.h.b16 %v2702
    %v2967 = vunpack.c.h.b16 %v2703
    %v2968 = vunpack.c.h.b16 %v2704
    %v2969 = vunpack.c.h.b16 %v2705
    %v2970 = vunpack.c.h.b16 %v2706
    %v2971 = vunpack.c.h.b16 %v2707
    %v2972 = vunpack.c.h.b16 %v2708
    %v2973 = vunpack.c.h.b16 %v2709
    %v2974 = vunpack.c.h.b16 %v2710
    %v2975 = vunpack.c.h.b16 %v2711
    %v2976 = vunpack.c.h.b16 %v2712
    %v2977 = vunpack.c.h.b16 %v2713
    %v2978 = vunpack.c.h.b16 %v2714
    %v2979 = vunpack.c.h.b16 %v2715
    %v2980 = vunpack.c.h.b16 %v2716
    %v2981 = vunpack.c.h.b16 %v2717
    %v2982 = vunpack.c.h.b16 %v2718
    %v2983 = vunpack.c.l.b16 %v2719
    %v2984 = vunpack.c.l.b16 %v2720
    %v2985 = vunpack.c.l.b16 %v2721
    %v2986 = vunpack.c.l.b16 %v2722
    %v2987 = vunpack.c.l.b16 %v2723
    %v2988 = vunpack.c.l.b16 %v2724
    %v2989 = vunpack.c.l.b16 %v2725
    %v2990 = vunpack.c.l.b16 %v2726
    %v2991 = vunpack.c.l.b16 %v2727
    %v2992 = vunpack.c.l.b16 %v2728
    %v2993 = vunpack.c.l.b16 %v2729
    %v2994 = vunpack.c.l.b16 %v2730
    %v2995 = vunpack.c.l.b16 %v2731
    %v2996 = vunpack.c.l.b16 %v2732
    %v2997 = vunpack.c.l.b16 %v2733
    %v2998 = vunpack.c.l.b16 %v2734
    %v2999 = vunpack.c.l.b16 %v2735
    %v3000 = vunpack.c.l.b16 %v2736
    %v3001 = vunpack.c.l.b16 %v2737
    %v3002 = vunpack.c.l.b16 %v2738
    %v3003 = vunpack.c.l.b16 %v2739
    %v3004 = vunpack.c.l.b16 %v2740
    %v3005 = vunpack.c.l.b16 %v2741
    %v3006 = vunpack.c.l.b16 %v2742
    %v3007 = vunpack.c.h.b16 %v2719
    %v3008 = vunpack.c.h.b16 %v2720
    %v3009 = vunpack.c.h.b16 %v2721
    %v3010 = vunpack.c.h.b16 %v2722
    %v3011 = vunpack.c.h.b16 %v2723
    %v3012 = vunpack.c.h.b16 %v2724
    %v3013 = vunpack.c.h.b16 %v2725
    %v3014 = vunpack.c.h.b16 %v2726
    %v3015 = vunpack.c.h.b16 %v2727
    %v3016 = vunpack.c.h.b16 %v2728
    %v3017 = vunpack.c.h.b16 %v2729
    %v3018 = vunpack.c.h.b16 %v2730
    %v3019 = vunpack.c.h.b16 %v2731
    %v3020 = vunpack.c.h.b16 %v2732
    %v3021 = vunpack.c.h.b16 %v2733
    %v3022 = vunpack.c.h.b16 %v2734
    %v3023 = vunpack.c.h.b16 %v2735
    %v3024 = vunpack.c.h.b16 %v2736
    %v3025 = vunpack.c.h.b16 %v2737
    %v3026 = vunpack.c.h.b16 %v2738
    %v3027 = vunpack.c.h.b16 %v2739
    %v3028 = vunpack.c.h.b16 %v2740
    %v3029 = vunpack.c.h.b16 %v2741
    %v3030 = vunpack.c.h.b16 %v2742
    %v3031 = vpack.c.b16 %v2840, %v2839
    %v3032 = vpack.c.b16 %v2842, %v2841
    %v3033 = vpack.c.b16 %v2844, %v2843
    %v3034 = vpack.c.b16 %v2846, %v2845
    %v3035 = vpack.c.b16 %v2848, %v2847
    %v3036 = vpack.c.b16 %v2850, %v2849
    %v3037 = vpack.c.b16 %v2852, %v2851
    %v3038 = vpack.c.b16 %v2854, %v2853
    %v3039 = vpack.c.b16 %v2856, %v2855
    %v3040 = vpack.c.b16 %v2858, %v2857
    %v3041 = vpack.c.b16 %v2860, %v2859
    %v3042 = vpack.c.b16 %v2862, %v2861
    %v3043 = vpack.c.b16 %v2864, %v2863
    %v3044 = vpack.c.b16 %v2866, %v2865
    %v3045 = vpack.c.b16 %v2868, %v2867
    %v3046 = vpack.c.b16 %v2870, %v2869
    %v3047 = vpack.c.b16 %v2872, %v2871
    %v3048 = vpack.c.b16 %v2874, %v2873
    %v3049 = vpack.c.b16 %v2876, %v2875
    %v3050 = vpack.c.b16 %v2878, %v2877
    %v3051 = vpack.c.b16 %v2880, %v2879
    %v3052 = vpack.c.b16 %v2882, %v2881
    %v3053 = vpack.c.b16 %v2884, %v2883
    %v3054 = vpack.c.b16 %v2886, %v2885
    %v3055 = vpack.c.b16 %v2888, %v2887
    %v3056 = vpack.c.b16 %v2890, %v2889
    %v3057 = vpack.c.b16 %v2892, %v2891
    %v3058 = vpack.c.b16 %v2894, %v2893
    %v3059 = vpack.c.b16 %v2896, %v2895
    %v3060 = vpack.c.b16 %v2898, %v2897
    %v3061 = vpack.c.b16 %v2900, %v2899
    %v3062 = vpack.c.b16 %v2902, %v2901
    %v3063 = vpack.c.b16 %v2904, %v2903
    %v3064 = vpack.c.b16 %v2906, %v2905
    %v3065 = vpack.c.b16 %v2908, %v2907
    %v3066 = vpack.c.b16 %v2910, %v2909
    %v3067 = vpack.c.b16 %v2912, %v2911
    %v3068 = vpack.c.b16 %v2914, %v2913
    %v3069 = vpack.c.b16 %v2916, %v2915
    %v3070 = vpack.c.b16 %v2918, %v2917
    %v3071 = vpack.c.b16 %v2920, %v2919
    %v3072 = vpack.c.b16 %v2922, %v2921
    %v3073 = vpack.c.b16 %v2924, %v2923
    %v3074 = vpack.c.b16 %v2926, %v2925
    %v3075 = vpack.c.b16 %v2928, %v2927
    %v3076 = vpack.c.b16 %v2930, %v2929
    %v3077 = vpack.c.b16 %v2932, %v2931
    %v3078 = vpack.c.b16 %v2934, %v2933
    %v3079 = vpack.c.b16 %v2936, %v2935
    %v3080 = vpack.c.b16 %v2938, %v2937
    %v3081 = vpack.c.b16 %v2940, %v2939
    %v3082 = vpack.c.b16 %v2942, %v2941
    %v3083 = vpack.c.b16 %v2944, %v2943
    %v3084 = vpack.c.b16 %v2946, %v2945
    %v3085 = vpack.c.b16 %v2948, %v2947
    %v3086 = vpack.c.b16 %v2950, %v2949
    %v3087 = vpack.c.b16 %v2952, %v2951
    %v3088 = vpack.c.b16 %v2954, %v2953
    %v3089 = vpack.c.b16 %v2956, %v2955
    %v3090 = vpack.c.b16 %v2958, %v2957
    %v3091 = vpack.c.b16 %v2960, %v2959
    %v3092 = vpack.c.b16 %v2962, %v2961
    %v3093 = vpack.c.b16 %v2964, %v2963
    %v3094 = vpack.c.b16 %v2966, %v2965
    %v3095 = vpack.c.b16 %v2968, %v2967
    %v3096 = vpack.c.b16 %v2970, %v2969
    %v3097 = vpack.c.b16 %v2972, %v2971
    %v3098 = vpack.c.b16 %v2974, %v2973
    %v3099 = vpack.c.b16 %v2976, %v2975
    %v3100 = vpack.c.b16 %v2978, %v2977
    %v3101 = vpack.c.b16 %v2980, %v2979
    %v3102 = vpack.c.b16 %v2982, %v2981
    %v3103 = vpack.c.b16 %v2984, %v2983
    %v3104 = vpack.c.b16 %v2986, %v2985
    %v3105 = vpack.c.b16 %v2988, %v2987
    %v3106 = vpack.c.b16 %v2990, %v2989
    %v3107 = vpack.c.b16 %v2992, %v2991
    %v3108 = vpack.c.b16 %v2994, %v2993
    %v3109 = vpack.c.b16 %v2996, %v2995
    %v3110 = vpack.c.b16 %v2998, %v2997
    %v3111 = vpack.c.b16 %v3000, %v2999
    %v3112 = vpack.c.b16 %v3002, %v3001
    %v3113 = vpack.c.b16 %v3004, %v3003
    %v3114 = vpack.c.b16 %v3006, %v3005
    %v3115 = vpack.c.b16 %v3008, %v3007
    %v3116 = vpack.c.b16 %v3010, %v3009
    %v3117 = vpack.c.b16 %v3012, %v3011
    %v3118 = vpack.c.b16 %v3014, %v3013
    %v3119 = vpack.c.b16 %v3016, %v3015
    %v3120 = vpack.c.b16 %v3018, %v3017
    %v3121 = vpack.c.b16 %v3020, %v3019
    %v3122 = vpack.c.b16 %v3022, %v3021
    %v3123 = vpack.c.b16 %v3024, %v3023
    %v3124 = vpack.c.b16 %v3026, %v3025
    %v3125 = vpack.c.b16 %v3028, %v3027
    %v3126 = vpack.c.b16 %v3030, %v3029
    %3223 = vst [vmem:[#allocation5] sm:$0xff] %v3031
    %3224 = vst [vmem:[#allocation5 + $0x8] sm:$0xff] %v3032
    %3225 = vst [vmem:[#allocation5 + $0x10] sm:$0xff] %v3033
    %3226 = vst [vmem:[#allocation5 + $0x18] sm:$0xff] %v3034
    %3227 = vst [vmem:[#allocation5 + $0x20] sm:$0xff] %v3035
    %3228 = vst [vmem:[#allocation5 + $0x28] sm:$0xff] %v3036
    %3229 = vst [vmem:[#allocation5 + $0x30] sm:$0xff] %v3037
    %3230 = vst [vmem:[#allocation5 + $0x38] sm:$0xff] %v3038
    %3231 = vst [vmem:[#allocation5 + $0x40] sm:$0xff] %v3039
    %3232 = vst [vmem:[#allocation5 + $0x48] sm:$0xff] %v3040
    %3233 = vst [vmem:[#allocation5 + $0x50] sm:$0xff] %v3041
    %3234 = vst [vmem:[#allocation5 + $0x58] sm:$0xff] %v3042
    %3235 = vst [vmem:[#allocation5 + $0x60] sm:$0xff] %v3043
    %3236 = vst [vmem:[#allocation5 + $0x68] sm:$0xff] %v3044
    %3237 = vst [vmem:[#allocation5 + $0x70] sm:$0xff] %v3045
    %3238 = vst [vmem:[#allocation5 + $0x78] sm:$0xff] %v3046
    %3239 = vst [vmem:[#allocation5 + $0x80] sm:$0xff] %v3047
    %3240 = vst [vmem:[#allocation5 + $0x88] sm:$0xff] %v3048
    %3241 = vst [vmem:[#allocation5 + $0x90] sm:$0xff] %v3049
    %3242 = vst [vmem:[#allocation5 + $0x98] sm:$0xff] %v3050
    %3243 = vst [vmem:[#allocation5 + $0xa0] sm:$0xff] %v3051
    %3244 = vst [vmem:[#allocation5 + $0xa8] sm:$0xff] %v3052
    %3245 = vst [vmem:[#allocation5 + $0xb0] sm:$0xff] %v3053
    %3246 = vst [vmem:[#allocation5 + $0xb8] sm:$0xff] %v3054
    %3247 = vst [vmem:[#allocation5 + $0xc0] sm:$0xff] %v3055
    %3248 = vst [vmem:[#allocation5 + $0xc8] sm:$0xff] %v3056
    %3249 = vst [vmem:[#allocation5 + $0xd0] sm:$0xff] %v3057
    %3250 = vst [vmem:[#allocation5 + $0xd8] sm:$0xff] %v3058
    %3251 = vst [vmem:[#allocation5 + $0xe0] sm:$0xff] %v3059
    %3252 = vst [vmem:[#allocation5 + $0xe8] sm:$0xff] %v3060
    %3253 = vst [vmem:[#allocation5 + $0xf0] sm:$0xff] %v3061
    %3254 = vst [vmem:[#allocation5 + $0xf8] sm:$0xff] %v3062
    %3255 = vst [vmem:[#allocation5 + $0x100] sm:$0xff] %v3063
    %3256 = vst [vmem:[#allocation5 + $0x108] sm:$0xff] %v3064
    %3257 = vst [vmem:[#allocation5 + $0x110] sm:$0xff] %v3065
    %3258 = vst [vmem:[#allocation5 + $0x118] sm:$0xff] %v3066
    %3259 = vst [vmem:[#allocation5 + $0x120] sm:$0xff] %v3067
    %3260 = vst [vmem:[#allocation5 + $0x128] sm:$0xff] %v3068
    %3261 = vst [vmem:[#allocation5 + $0x130] sm:$0xff] %v3069
    %3262 = vst [vmem:[#allocation5 + $0x138] sm:$0xff] %v3070
    %3263 = vst [vmem:[#allocation5 + $0x140] sm:$0xff] %v3071
    %3264 = vst [vmem:[#allocation5 + $0x148] sm:$0xff] %v3072
    %3265 = vst [vmem:[#allocation5 + $0x150] sm:$0xff] %v3073
    %3266 = vst [vmem:[#allocation5 + $0x158] sm:$0xff] %v3074
    %3267 = vst [vmem:[#allocation5 + $0x160] sm:$0xff] %v3075
    %3268 = vst [vmem:[#allocation5 + $0x168] sm:$0xff] %v3076
    %3269 = vst [vmem:[#allocation5 + $0x170] sm:$0xff] %v3077
    %3270 = vst [vmem:[#allocation5 + $0x178] sm:$0xff] %v3078
    %3271 = vst [vmem:[#allocation5 + $0x180] sm:$0xff] %v3079
    %3272 = vst [vmem:[#allocation5 + $0x188] sm:$0xff] %v3080
    %3273 = vst [vmem:[#allocation5 + $0x190] sm:$0xff] %v3081
    %3274 = vst [vmem:[#allocation5 + $0x198] sm:$0xff] %v3082
    %3275 = vst [vmem:[#allocation5 + $0x1a0] sm:$0xff] %v3083
    %3276 = vst [vmem:[#allocation5 + $0x1a8] sm:$0xff] %v3084
    %3277 = vst [vmem:[#allocation5 + $0x1b0] sm:$0xff] %v3085
    %3278 = vst [vmem:[#allocation5 + $0x1b8] sm:$0xff] %v3086
    %3279 = vst [vmem:[#allocation5 + $0x1c0] sm:$0xff] %v3087
    %3280 = vst [vmem:[#allocation5 + $0x1c8] sm:$0xff] %v3088
    %3281 = vst [vmem:[#allocation5 + $0x1d0] sm:$0xff] %v3089
    %3282 = vst [vmem:[#allocation5 + $0x1d8] sm:$0xff] %v3090
    %3283 = vst [vmem:[#allocation5 + $0x1e0] sm:$0xff] %v3091
    %3284 = vst [vmem:[#allocation5 + $0x1e8] sm:$0xff] %v3092
    %3285 = vst [vmem:[#allocation5 + $0x1f0] sm:$0xff] %v3093
    %3286 = vst [vmem:[#allocation5 + $0x1f8] sm:$0xff] %v3094
    %3287 = vst [vmem:[#allocation5 + $0x200] sm:$0xff] %v3095
    %3288 = vst [vmem:[#allocation5 + $0x208] sm:$0xff] %v3096
    %3289 = vst [vmem:[#allocation5 + $0x210] sm:$0xff] %v3097
    %3290 = vst [vmem:[#allocation5 + $0x218] sm:$0xff] %v3098
    %3291 = vst [vmem:[#allocation5 + $0x220] sm:$0xff] %v3099
    %3292 = vst [vmem:[#allocation5 + $0x228] sm:$0xff] %v3100
    %3293 = vst [vmem:[#allocation5 + $0x230] sm:$0xff] %v3101
    %3294 = vst [vmem:[#allocation5 + $0x238] sm:$0xff] %v3102
    %3295 = vst [vmem:[#allocation5 + $0x240] sm:$0xff] %v3103
    %3296 = vst [vmem:[#allocation5 + $0x248] sm:$0xff] %v3104
    %3297 = vst [vmem:[#allocation5 + $0x250] sm:$0xff] %v3105
    %3298 = vst [vmem:[#allocation5 + $0x258] sm:$0xff] %v3106
    %3299 = vst [vmem:[#allocation5 + $0x260] sm:$0xff] %v3107
    %3300 = vst [vmem:[#allocation5 + $0x268] sm:$0xff] %v3108
    %3301 = vst [vmem:[#allocation5 + $0x270] sm:$0xff] %v3109
    %3302 = vst [vmem:[#allocation5 + $0x278] sm:$0xff] %v3110
    %3303 = vst [vmem:[#allocation5 + $0x280] sm:$0xff] %v3111
    %3304 = vst [vmem:[#allocation5 + $0x288] sm:$0xff] %v3112
    %3305 = vst [vmem:[#allocation5 + $0x290] sm:$0xff] %v3113
    %3306 = vst [vmem:[#allocation5 + $0x298] sm:$0xff] %v3114
    %3307 = vst [vmem:[#allocation5 + $0x2a0] sm:$0xff] %v3115
    %3308 = vst [vmem:[#allocation5 + $0x2a8] sm:$0xff] %v3116
    %3309 = vst [vmem:[#allocation5 + $0x2b0] sm:$0xff] %v3117
    %3310 = vst [vmem:[#allocation5 + $0x2b8] sm:$0xff] %v3118
    %3311 = vst [vmem:[#allocation5 + $0x2c0] sm:$0xff] %v3119
    %3312 = vst [vmem:[#allocation5 + $0x2c8] sm:$0xff] %v3120
    %3313 = vst [vmem:[#allocation5 + $0x2d0] sm:$0xff] %v3121
    %3314 = vst [vmem:[#allocation5 + $0x2d8] sm:$0xff] %v3122
    %3315 = vst [vmem:[#allocation5 + $0x2e0] sm:$0xff] %v3123
    %3316 = vst [vmem:[#allocation5 + $0x2e8] sm:$0xff] %v3124
    %3317 = vst [vmem:[#allocation5 + $0x2f0] sm:$0xff] %v3125
    %3318 = vst [vmem:[#allocation5 + $0x2f8] sm:$0xff] %v3126
    // Predicated region
    $region18: #{tpu_custom_call.1} parent=1 // pred_check
      _
    $region19: #{tpu_custom_call.1} parent=1 // pred_check_branch
      %3320 = sbr.rel (0) target = $region21
    $region20: #{tpu_custom_call.1} parent=1 // pred_region
      %s3322 = ssub.s32 12288, 12288
      %3323 = vsyncadd [#allocation4], %s3322
      %s3324 = sshll.u32 [#allocation5], 4
      %s3325 = int_to_ptr.vmem [resolvable:$true] %s3324
      %3330 = dma.vmem_to_hbm [thread:$0]  %s3325, 12288, %s3, [#allocation4], 1536, 1536, 96
    $region21: #{tpu_custom_call.1} parent=1 // pred_fallthru
      _
    // Predicated region
    $region22: #{tpu_custom_call.1} parent=1 // pred_check
      _
    $region23: #{tpu_custom_call.1} parent=1 // pred_check_branch
      %3332 = sbr.rel (0) target = $region25
    $region24: #{tpu_custom_call.1} parent=1 // pred_region
      %3333 = dma.done [#allocation4], 12288
    $region25: #{tpu_custom_call.1} parent=1 // pred_fallthru
      _
    %3334 = vsyncpa [#allocation3], 1
    %3335 = vsyncpa [#allocation4], 1

</llo_original>
